<compile_context>
chip_gen: v5e
topology: v5e:2x2
jax: 0.10.0
libtpu: 0.0.40
codegen_flags: <defaults>
</compile_context>

<pallas_src>
import functools

import jax
import jax.numpy as jnp
from jax.experimental import pallas as pl
from jax.experimental.pallas import tpu as pltpu


# ----------------------------------------------------------------------------
# Helpers
# ----------------------------------------------------------------------------
def _round_up(x: int, m: int) -> int:
    return ((x + m - 1) // m) * m


def _pick_tile(dim: int, target: int, min_blocks: int = 1) -> tuple[int, int]:
    """Largest multiple-of-128 tile <= target that divides the 128-padded dim.

    With min_blocks > 1 the tile is shrunk (but never below 128) until the dim
    holds at least that many blocks, so parallel grid axes can feed both
    TensorCores on v7x.  Returns (tile, padded_dim).
    """
    padded = _round_up(dim, 128)
    tile = min(padded, _round_up(max(target, 128), 128))
    while padded % tile:
        tile -= 128
    while min_blocks > 1 and padded // tile < min_blocks and tile > 128:
        cand = tile - 128
        while padded % cand:
            cand -= 128
        tile = cand
    return tile, padded


def _a_block_spec(tm: int, tk: int, deep: bool) -> pl.BlockSpec:
    """BlockSpec for the streamed A operand; 3-deep buffered when useful."""
    index_map = lambda i, j, kk: (i, kk)
    if deep:
        try:
            return pl.BlockSpec((tm, tk), index_map, pipeline_mode=pl.Buffered(3))
        except Exception:  # older jax without pipeline_mode/Buffered: default 2-deep
            pass
    return pl.BlockSpec((tm, tk), index_map)


# ----------------------------------------------------------------------------
# Fused  act(A @ B + bias)  kernel: bf16 MXU operands, f32 accumulation
# directly in the (f32) output tile.  Static single-K fast path.
# ----------------------------------------------------------------------------
def _matmul_kernel(a_ref, b_ref, bias_ref, o_ref, *, apply_relu: bool, n_k: int):
    if n_k == 1:
        # Single K step: no accumulator init / copy, write the epilogue directly.
        out = jnp.dot(a_ref[...], b_ref[...], preferred_element_type=jnp.float32)
        out = out + bias_ref[...]
        if apply_relu:
            out = jnp.maximum(out, 0.0)
        o_ref[...] = out.astype(o_ref.dtype)
    else:
        k = pl.program_id(2)

        @pl.when(k == 0)
        def _():
            o_ref[...] = jnp.zeros_like(o_ref)

        o_ref[...] += jnp.dot(
            a_ref[...], b_ref[...], preferred_element_type=jnp.float32
        )

        @pl.when(k == pl.num_programs(2) - 1)
        def _():
            out = o_ref[...] + bias_ref[...]
            if apply_relu:
                out = jnp.maximum(out, 0.0)
            o_ref[...] = out.astype(o_ref.dtype)


def linear_pallas(
    a: jax.Array,
    b: jax.Array,
    bias: jax.Array | None = None,
    *,
    apply_relu: bool = False,
    tm_target: int = 512,
    tn_target: int = 512,
    tk_target: int = 1024,
) -> jax.Array:
    """Computes act(a @ b + bias) with one tiled Pallas TPU matmul.

    a: [M, K], b: [K, N], bias: [N] or None.  Operands are fed to the MXU in
    bfloat16; accumulation, bias add and ReLU happen in float32 and the result
    is returned in float32.  Unaligned M/K/N are zero-padded to lane-aligned
    tiles and sliced back (no-op when inputs are pre-aligned).
    """
    m, k = a.shape
    k2, n = b.shape
    assert k == k2, "inner dims must match"

    # bf16 operands: full-rate MXU on v5e/v6e/v7x, half the HBM/VMEM traffic.
    a_bf = a if a.dtype == jnp.bfloat16 else a.astype(jnp.bfloat16)
    b_bf = b if b.dtype == jnp.bfloat16 else b.astype(jnp.bfloat16)
    bias_f = jnp.zeros((n,), jnp.float32) if bias is None else bias.astype(jnp.float32)

    tm, mp = _pick_tile(m, tm_target, min_blocks=2)  # >=2 row blocks -> both v7x TCs
    tn, np_ = _pick_tile(n, tn_target)
    tk, kp = _pick_tile(k, tk_target)

    a_p = a_bf if (mp, kp) == (m, k) else jnp.pad(a_bf, ((0, mp - m), (0, kp - k)))
    b_p = b_bf if (kp, np_) == (k, n) else jnp.pad(b_bf, ((0, kp - k), (0, np_ - n)))
    bias_p = (bias_f if np_ == n else jnp.pad(bias_f, (0, np_ - n))).reshape(1, np_)

    grid = (mp // tm, np_ // tn, kp // tk)
    n_k = grid[2]
    deep = grid[0] * grid[2] >= 3  # enough distinct A tiles to triple-buffer
    abuf = 3 if deep else 2

    # Scoped-VMEM budget: buffered bf16 input tiles + f32 output/accumulator
    # tiles with headroom; capped at 56 MiB so it fits v7x's 64 MiB physical VMEM
    # (v5e/v6e have 128 MiB so this is never the binding constraint there).
    est = abuf * tm * tk * 2 + 2 * tk * tn * 2 + 2 * tn * 4 + 2 * tm * tn * 4
    vmem_limit = int(min(max(2 * est, 32 << 20), 56 << 20))

    cost = pl.CostEstimate(
        flops=2 * m * n * k,
        transcendentals=0,
        bytes_accessed=2 * (m * k + k * n) + 4 * (m * n + n),
    )

    out_p = pl.pallas_call(
        functools.partial(_matmul_kernel, apply_relu=apply_relu, n_k=n_k),
        out_shape=jax.ShapeDtypeStruct((mp, np_), jnp.float32),
        grid_spec=pltpu.PrefetchScalarGridSpec(
            num_scalar_prefetch=0,
            grid=grid,
            in_specs=[
                _a_block_spec(tm, tk, deep),                       # A row/K tile
                pl.BlockSpec((tk, tn), lambda i, j, kk: (kk, j)),  # B K/col tile
                pl.BlockSpec((1, tn), lambda i, j, kk: (0, j)),    # bias row
            ],
            out_specs=pl.BlockSpec((tm, tn), lambda i, j, kk: (i, j)),
        ),
        compiler_params=pltpu.CompilerParams(
            dimension_semantics=("parallel", "parallel", "arbitrary"),
            vmem_limit_bytes=vmem_limit,
        ),
        cost_estimate=cost,
    )(a_p, b_p, bias_p)

    return out_p if (mp, np_) == (m, n) else out_p[:m, :n]


# ----------------------------------------------------------------------------
# GraphEncoder forward
# ----------------------------------------------------------------------------
def gcn_layer(h, adj_bf16, w, b, *, relu: bool):
    """GCNConv_dgl: Adj @ (h @ W + b); ReLU fused into the aggregation matmul."""
    h = linear_pallas(h, w, b, apply_relu=False)  # node-feature Linear
    h = linear_pallas(
        adj_bf16, h, None, apply_relu=relu,       # message passing (+ ReLU)
        tm_target=1024, tn_target=512, tk_target=1024,
    )
    return h


def graph_encoder_forward(x, adj, params):
    """Returns (z, emb) matching GraphEncoder.forward (sparse path, eval mode)."""
    n = x.shape[0]
    n_pad = _round_up(n, 256)
    # Pad + bf16-cast the N x N adjacency ONCE; every layer reuses it untouched.
    adj_p = adj if n_pad == n else jnp.pad(adj, ((0, n_pad - n), (0, n_pad - n)))
    adj_bf16 = adj_p.astype(jnp.bfloat16)
    h = x if n_pad == n else jnp.pad(x, ((0, n_pad - n), (0, 0)))
    h = h.astype(jnp.float32)

    gcn = params["gcn"]
    for w, b in gcn[:-1]:
        h = gcn_layer(h, adj_bf16, w, b, relu=True)
        # TODO(synk): F.dropout skipped (training=False semantics).
    w, b = gcn[-1]
    h = gcn_layer(h, adj_bf16, w, b, relu=False)

    # proj_head: Linear -> ReLU -> Linear (ReLU fused into the first matmul).
    z = linear_pallas(h, params["proj1_w"], params["proj1_b"], apply_relu=True)
    z = linear_pallas(z, params["proj2_w"], params["proj2_b"], apply_relu=False)
    return z[:n], h[:n]


# ----------------------------------------------------------------------------
# Demo / correctness check
# ----------------------------------------------------------------------------
if __name__ == "__main__":
    key = jax.random.PRNGKey(0)
    n_nodes, in_dim, hidden_dim, emb_dim, proj_dim = 256, 128, 128, 128, 128
    nlayers = 2

    keys = jax.random.split(key, 12)
    x = jax.random.normal(keys[0], (n_nodes, in_dim), jnp.float32)
    raw = jax.random.uniform(keys[1], (n_nodes, n_nodes), jnp.float32)
    adj = raw / raw.sum(axis=-1, keepdims=True)  # row-normalized dense adjacency

    def glorot(k_, fan_in, fan_out):
        scale = (2.0 / (fan_in + fan_out)) ** 0.5
        return jax.random.normal(k_, (fan_in, fan_out), jnp.float32) * scale

    dims = [in_dim] + [hidden_dim] * (nlayers - 1) + [emb_dim]
    gcn_params = []
    for li in range(nlayers):
        wk, bk = jax.random.split(keys[2 + li])
        w = glorot(wk, dims[li], dims[li + 1])
        b = jax.random.normal(bk, (dims[li + 1],), jnp.float32) * 0.01
        gcn_params.append((w, b))

    params = {
        "gcn": gcn_params,
        "proj1_w": glorot(keys[8], emb_dim, proj_dim),
        "proj1_b": jnp.zeros((proj_dim,), jnp.float32),
        "proj2_w": glorot(keys[9], proj_dim, proj_dim),
        "proj2_b": jnp.zeros((proj_dim,), jnp.float32),
    }

    fwd = jax.jit(graph_encoder_forward)
    z, emb = fwd(x, adj, params)
    jax.block_until_ready((z, emb))

    # Pure-JAX reference with matching numerics: bf16 matmul operands, f32 acc.
    def mm(a_, b_):
        return jnp.matmul(a_.astype(jnp.bfloat16), b_.astype(jnp.bfloat16),
                          preferred_element_type=jnp.float32)

    h_ref = x
    for (w, b) in gcn_params[:-1]:
        h_ref = jax.nn.relu(mm(adj, mm(h_ref, w) + b))
    w, b = gcn_params[-1]
    h_ref = mm(adj, mm(h_ref, w) + b)
    z_ref = mm(jax.nn.relu(mm(h_ref, params["proj1_w"]) + params["proj1_b"]),
               params["proj2_w"]) + params["proj2_b"]

    assert z.shape == (n_nodes, proj_dim) and emb.shape == (n_nodes, emb_dim)
    assert jnp.allclose(emb, h_ref, atol=5e-3, rtol=5e-3), "embedding mismatch"
    assert jnp.allclose(z, z_ref, atol=5e-3, rtol=5e-3), "projection mismatch"

    # Extra check: exercise the multi-K accumulation path (kp // tk > 1)
    # and the 3-deep-buffered adjacency-style BlockSpec.
    a_t = jax.random.normal(keys[10], (256, 384), jnp.float32)
    b_t = jax.random.normal(keys[11], (384, 128), jnp.float32)
    out_t = linear_pallas(a_t, b_t, None, apply_relu=False, tk_target=128)
    ref_t = jnp.matmul(a_t.astype(jnp.bfloat16), b_t.astype(jnp.bfloat16),
                       preferred_element_type=jnp.float32)
    jax.block_until_ready(out_t)
    assert jnp.allclose(out_t, ref_t, atol=5e-3, rtol=5e-3), "multi-K matmul mismatch"

    print("KERNEL_OK")
</pallas_src>

<mosaic_0001>
module attributes {stable_mosaic.version = 11 : i64} {
  func.func @_matmul_kernel(%arg0: i32, %arg1: i32, %arg2: i32, %arg3: memref<128x128xbf16, #tpu.memory_space<vmem>>, %arg4: memref<128x128xbf16, #tpu.memory_space<vmem>>, %arg5: memref<1x128xf32, #tpu.memory_space<vmem>>, %arg6: memref<128x128xf32, #tpu.memory_space<vmem>>) attributes {dimension_semantics = [#tpu.dimension_semantics<parallel>, #tpu.dimension_semantics<parallel>, #tpu.dimension_semantics<arbitrary>], iteration_bounds = array<i64: 2, 1, 1>, scalar_prefetch = 0 : i64, scratch_operands = 0 : i64, tpu.core_type = #tpu.core_type<tc>, window_params = [{transform_indices = @transform_0, window_bounds = array<i64: 128, 128>}, {transform_indices = @transform_1, window_bounds = array<i64: 128, 128>}, {transform_indices = @transform_2, window_bounds = array<i64: 1, 128>}, {transform_indices = @transform_3, window_bounds = array<i64: 128, 128>}]} {
    %c0 = arith.constant 0 : index
    %c0_0 = arith.constant 0 : index
    %0 = vector.load %arg3[%c0, %c0_0] : memref<128x128xbf16, #tpu.memory_space<vmem>>, vector<128x128xbf16>
    %c0_1 = arith.constant 0 : index
    %c0_2 = arith.constant 0 : index
    %1 = vector.load %arg4[%c0_1, %c0_2] : memref<128x128xbf16, #tpu.memory_space<vmem>>, vector<128x128xbf16>
    %cst = arith.constant dense<0.000000e+00> : vector<128x128xf32>
    %2 = tpu.matmul %0, %1, %cst {dimension_numbers = #tpu.dot_dimension_numbers<[1], [0], [0], [1], [0, 0, 1, 1], [], []>} : vector<128x128xbf16>, vector<128x128xbf16>, vector<128x128xf32> -> vector<128x128xf32>
    %c0_3 = arith.constant 0 : index
    %c0_4 = arith.constant 0 : index
    %3 = vector.load %arg5[%c0_3, %c0_4] : memref<1x128xf32, #tpu.memory_space<vmem>>, vector<1x128xf32>
    %4 = vector.broadcast %3 : vector<1x128xf32> to vector<128x128xf32>
    %5 = arith.addf %2, %4 : vector<128x128xf32>
    %c0_5 = arith.constant 0 : index
    %c0_6 = arith.constant 0 : index
    %6 = vector.load %arg6[%c0_5, %c0_6] : memref<128x128xf32, #tpu.memory_space<vmem>>, vector<128x128xf32>
    tpu.vector_store %arg6[%c0_5, %c0_6], %5 {strides = array<i32>} : memref<128x128xf32, #tpu.memory_space<vmem>>, vector<128x128xf32>,
    return
  }
  func.func @transform_0(%arg0: i32, %arg1: i32, %arg2: i32) -> (i32, i32) {
    %c0_i32 = arith.constant 0 : i32
    return %arg0, %arg2 : i32, i32
  }
  func.func @transform_1(%arg0: i32, %arg1: i32, %arg2: i32) -> (i32, i32) {
    %c0_i32 = arith.constant 0 : i32
    return %arg2, %arg1 : i32, i32
  }
  func.func @transform_2(%arg0: i32, %arg1: i32, %arg2: i32) -> (i32, i32) {
    %c0_i32 = arith.constant 0 : i32
    %c0_i32_0 = arith.constant 0 : i32
    return %c0_i32, %arg1 : i32, i32
  }
  func.func @transform_3(%arg0: i32, %arg1: i32, %arg2: i32) -> (i32, i32) {
    %c0_i32 = arith.constant 0 : i32
    return %arg0, %arg1 : i32, i32
  }
}

module attributes {stable_mosaic.version = 11 : i64} {
  func.func @_matmul_kernel(%arg0: i32, %arg1: i32, %arg2: i32, %arg3: memref<128x256xbf16, #tpu.memory_space<vmem>>, %arg4: memref<256x128xbf16, #tpu.memory_space<vmem>>, %arg5: memref<1x128xf32, #tpu.memory_space<vmem>>, %arg6: memref<128x128xf32, #tpu.memory_space<vmem>>) attributes {dimension_semantics = [#tpu.dimension_semantics<parallel>, #tpu.dimension_semantics<parallel>, #tpu.dimension_semantics<arbitrary>], iteration_bounds = array<i64: 2, 1, 1>, scalar_prefetch = 0 : i64, scratch_operands = 0 : i64, tpu.core_type = #tpu.core_type<tc>, window_params = [{transform_indices = @transform_0, window_bounds = array<i64: 128, 256>}, {transform_indices = @transform_1, window_bounds = array<i64: 256, 128>}, {transform_indices = @transform_2, window_bounds = array<i64: 1, 128>}, {transform_indices = @transform_3, window_bounds = array<i64: 128, 128>}]} {
    %c0 = arith.constant 0 : index
    %c0_0 = arith.constant 0 : index
    %0 = vector.load %arg3[%c0, %c0_0] : memref<128x256xbf16, #tpu.memory_space<vmem>>, vector<128x256xbf16>
    %c0_1 = arith.constant 0 : index
    %c0_2 = arith.constant 0 : index
    %1 = vector.load %arg4[%c0_1, %c0_2] : memref<256x128xbf16, #tpu.memory_space<vmem>>, vector<256x128xbf16>
    %cst = arith.constant dense<0.000000e+00> : vector<128x128xf32>
    %2 = tpu.matmul %0, %1, %cst {dimension_numbers = #tpu.dot_dimension_numbers<[1], [0], [0], [1], [0, 0, 1, 1], [], []>} : vector<128x256xbf16>, vector<256x128xbf16>, vector<128x128xf32> -> vector<128x128xf32>
    %c0_3 = arith.constant 0 : index
    %c0_4 = arith.constant 0 : index
    %3 = vector.load %arg5[%c0_3, %c0_4] : memref<1x128xf32, #tpu.memory_space<vmem>>, vector<1x128xf32>
    %4 = vector.broadcast %3 : vector<1x128xf32> to vector<128x128xf32>
    %5 = arith.addf %2, %4 : vector<128x128xf32>
    %c0_5 = arith.constant 0 : index
    %c0_6 = arith.constant 0 : index
    %6 = vector.load %arg6[%c0_5, %c0_6] : memref<128x128xf32, #tpu.memory_space<vmem>>, vector<128x128xf32>
    tpu.vector_store %arg6[%c0_5, %c0_6], %5 {strides = array<i32>} : memref<128x128xf32, #tpu.memory_space<vmem>>, vector<128x128xf32>,
    return
  }
  func.func @transform_0(%arg0: i32, %arg1: i32, %arg2: i32) -> (i32, i32) {
    %c0_i32 = arith.constant 0 : i32
    return %arg0, %arg2 : i32, i32
  }
  func.func @transform_1(%arg0: i32, %arg1: i32, %arg2: i32) -> (i32, i32) {
    %c0_i32 = arith.constant 0 : i32
    return %arg2, %arg1 : i32, i32
  }
  func.func @transform_2(%arg0: i32, %arg1: i32, %arg2: i32) -> (i32, i32) {
    %c0_i32 = arith.constant 0 : i32
    %c0_i32_0 = arith.constant 0 : i32
    return %c0_i32, %arg1 : i32, i32
  }
  func.func @transform_3(%arg0: i32, %arg1: i32, %arg2: i32) -> (i32, i32) {
    %c0_i32 = arith.constant 0 : i32
    return %arg0, %arg1 : i32, i32
  }
}

module attributes {stable_mosaic.version = 11 : i64} {
  func.func @_matmul_kernel(%arg0: i32, %arg1: i32, %arg2: i32, %arg3: memref<128x256xbf16, #tpu.memory_space<vmem>>, %arg4: memref<256x128xbf16, #tpu.memory_space<vmem>>, %arg5: memref<1x128xf32, #tpu.memory_space<vmem>>, %arg6: memref<128x128xf32, #tpu.memory_space<vmem>>) attributes {dimension_semantics = [#tpu.dimension_semantics<parallel>, #tpu.dimension_semantics<parallel>, #tpu.dimension_semantics<arbitrary>], iteration_bounds = array<i64: 2, 1, 1>, scalar_prefetch = 0 : i64, scratch_operands = 0 : i64, tpu.core_type = #tpu.core_type<tc>, window_params = [{transform_indices = @transform_0, window_bounds = array<i64: 128, 256>}, {transform_indices = @transform_1, window_bounds = array<i64: 256, 128>}, {transform_indices = @transform_2, window_bounds = array<i64: 1, 128>}, {transform_indices = @transform_3, window_bounds = array<i64: 128, 128>}]} {
    %c0 = arith.constant 0 : index
    %c0_0 = arith.constant 0 : index
    %0 = vector.load %arg3[%c0, %c0_0] : memref<128x256xbf16, #tpu.memory_space<vmem>>, vector<128x256xbf16>
    %c0_1 = arith.constant 0 : index
    %c0_2 = arith.constant 0 : index
    %1 = vector.load %arg4[%c0_1, %c0_2] : memref<256x128xbf16, #tpu.memory_space<vmem>>, vector<256x128xbf16>
    %cst = arith.constant dense<0.000000e+00> : vector<128x128xf32>
    %2 = tpu.matmul %0, %1, %cst {dimension_numbers = #tpu.dot_dimension_numbers<[1], [0], [0], [1], [0, 0, 1, 1], [], []>} : vector<128x256xbf16>, vector<256x128xbf16>, vector<128x128xf32> -> vector<128x128xf32>
    %c0_3 = arith.constant 0 : index
    %c0_4 = arith.constant 0 : index
    %3 = vector.load %arg5[%c0_3, %c0_4] : memref<1x128xf32, #tpu.memory_space<vmem>>, vector<1x128xf32>
    %4 = vector.broadcast %3 : vector<1x128xf32> to vector<128x128xf32>
    %5 = arith.addf %2, %4 : vector<128x128xf32>
    %cst_5 = arith.constant 0.000000e+00 : f32
    %6 = vector.broadcast %cst_5 : f32 to vector<128x128xf32>
    %7 = arith.maximumf %5, %6 : vector<128x128xf32>
    %c0_6 = arith.constant 0 : index
    %c0_7 = arith.constant 0 : index
    %8 = vector.load %arg6[%c0_6, %c0_7] : memref<128x128xf32, #tpu.memory_space<vmem>>, vector<128x128xf32>
    tpu.vector_store %arg6[%c0_6, %c0_7], %7 {strides = array<i32>} : memref<128x128xf32, #tpu.memory_space<vmem>>, vector<128x128xf32>,
    return
  }
  func.func @transform_0(%arg0: i32, %arg1: i32, %arg2: i32) -> (i32, i32) {
    %c0_i32 = arith.constant 0 : i32
    return %arg0, %arg2 : i32, i32
  }
  func.func @transform_1(%arg0: i32, %arg1: i32, %arg2: i32) -> (i32, i32) {
    %c0_i32 = arith.constant 0 : i32
    return %arg2, %arg1 : i32, i32
  }
  func.func @transform_2(%arg0: i32, %arg1: i32, %arg2: i32) -> (i32, i32) {
    %c0_i32 = arith.constant 0 : i32
    %c0_i32_0 = arith.constant 0 : i32
    return %c0_i32, %arg1 : i32, i32
  }
  func.func @transform_3(%arg0: i32, %arg1: i32, %arg2: i32) -> (i32, i32) {
    %c0_i32 = arith.constant 0 : i32
    return %arg0, %arg1 : i32, i32
  }
}

module attributes {stable_mosaic.version = 11 : i64} {
  func.func @_matmul_kernel(%arg0: i32, %arg1: i32, %arg2: i32, %arg3: memref<128x128xbf16, #tpu.memory_space<vmem>>, %arg4: memref<128x128xbf16, #tpu.memory_space<vmem>>, %arg5: memref<1x128xf32, #tpu.memory_space<vmem>>, %arg6: memref<128x128xf32, #tpu.memory_space<vmem>>) attributes {dimension_semantics = [#tpu.dimension_semantics<parallel>, #tpu.dimension_semantics<parallel>, #tpu.dimension_semantics<arbitrary>], iteration_bounds = array<i64: 2, 1, 1>, scalar_prefetch = 0 : i64, scratch_operands = 0 : i64, tpu.core_type = #tpu.core_type<tc>, window_params = [{transform_indices = @transform_0, window_bounds = array<i64: 128, 128>}, {transform_indices = @transform_1, window_bounds = array<i64: 128, 128>}, {transform_indices = @transform_2, window_bounds = array<i64: 1, 128>}, {transform_indices = @transform_3, window_bounds = array<i64: 128, 128>}]} {
    %c0 = arith.constant 0 : index
    %c0_0 = arith.constant 0 : index
    %0 = vector.load %arg3[%c0, %c0_0] : memref<128x128xbf16, #tpu.memory_space<vmem>>, vector<128x128xbf16>
    %c0_1 = arith.constant 0 : index
    %c0_2 = arith.constant 0 : index
    %1 = vector.load %arg4[%c0_1, %c0_2] : memref<128x128xbf16, #tpu.memory_space<vmem>>, vector<128x128xbf16>
    %cst = arith.constant dense<0.000000e+00> : vector<128x128xf32>
    %2 = tpu.matmul %0, %1, %cst {dimension_numbers = #tpu.dot_dimension_numbers<[1], [0], [0], [1], [0, 0, 1, 1], [], []>} : vector<128x128xbf16>, vector<128x128xbf16>, vector<128x128xf32> -> vector<128x128xf32>
    %c0_3 = arith.constant 0 : index
    %c0_4 = arith.constant 0 : index
    %3 = vector.load %arg5[%c0_3, %c0_4] : memref<1x128xf32, #tpu.memory_space<vmem>>, vector<1x128xf32>
    %4 = vector.broadcast %3 : vector<1x128xf32> to vector<128x128xf32>
    %5 = arith.addf %2, %4 : vector<128x128xf32>
    %cst_5 = arith.constant 0.000000e+00 : f32
    %6 = vector.broadcast %cst_5 : f32 to vector<128x128xf32>
    %7 = arith.maximumf %5, %6 : vector<128x128xf32>
    %c0_6 = arith.constant 0 : index
    %c0_7 = arith.constant 0 : index
    %8 = vector.load %arg6[%c0_6, %c0_7] : memref<128x128xf32, #tpu.memory_space<vmem>>, vector<128x128xf32>
    tpu.vector_store %arg6[%c0_6, %c0_7], %7 {strides = array<i32>} : memref<128x128xf32, #tpu.memory_space<vmem>>, vector<128x128xf32>,
    return
  }
  func.func @transform_0(%arg0: i32, %arg1: i32, %arg2: i32) -> (i32, i32) {
    %c0_i32 = arith.constant 0 : i32
    return %arg0, %arg2 : i32, i32
  }
  func.func @transform_1(%arg0: i32, %arg1: i32, %arg2: i32) -> (i32, i32) {
    %c0_i32 = arith.constant 0 : i32
    return %arg2, %arg1 : i32, i32
  }
  func.func @transform_2(%arg0: i32, %arg1: i32, %arg2: i32) -> (i32, i32) {
    %c0_i32 = arith.constant 0 : i32
    %c0_i32_0 = arith.constant 0 : i32
    return %c0_i32, %arg1 : i32, i32
  }
  func.func @transform_3(%arg0: i32, %arg1: i32, %arg2: i32) -> (i32, i32) {
    %c0_i32 = arith.constant 0 : i32
    return %arg0, %arg1 : i32, i32
  }
}

module attributes {stable_mosaic.version = 11 : i64} {
  func.func @_matmul_kernel(%arg0: i32, %arg1: i32, %arg2: i32, %arg3: memref<128x128xbf16, #tpu.memory_space<vmem>>, %arg4: memref<128x128xbf16, #tpu.memory_space<vmem>>, %arg5: memref<1x128xf32, #tpu.memory_space<vmem>>, %arg6: memref<128x128xf32, #tpu.memory_space<vmem>>) attributes {dimension_semantics = [#tpu.dimension_semantics<parallel>, #tpu.dimension_semantics<parallel>, #tpu.dimension_semantics<arbitrary>], iteration_bounds = array<i64: 2, 1, 1>, scalar_prefetch = 0 : i64, scratch_operands = 0 : i64, tpu.core_type = #tpu.core_type<tc>, window_params = [{transform_indices = @transform_0, window_bounds = array<i64: 128, 128>}, {transform_indices = @transform_1, window_bounds = array<i64: 128, 128>}, {transform_indices = @transform_2, window_bounds = array<i64: 1, 128>}, {transform_indices = @transform_3, window_bounds = array<i64: 128, 128>}]} {
    %c0 = arith.constant 0 : index
    %c0_0 = arith.constant 0 : index
    %0 = vector.load %arg3[%c0, %c0_0] : memref<128x128xbf16, #tpu.memory_space<vmem>>, vector<128x128xbf16>
    %c0_1 = arith.constant 0 : index
    %c0_2 = arith.constant 0 : index
    %1 = vector.load %arg4[%c0_1, %c0_2] : memref<128x128xbf16, #tpu.memory_space<vmem>>, vector<128x128xbf16>
    %cst = arith.constant dense<0.000000e+00> : vector<128x128xf32>
    %2 = tpu.matmul %0, %1, %cst {dimension_numbers = #tpu.dot_dimension_numbers<[1], [0], [0], [1], [0, 0, 1, 1], [], []>} : vector<128x128xbf16>, vector<128x128xbf16>, vector<128x128xf32> -> vector<128x128xf32>
    %c0_3 = arith.constant 0 : index
    %c0_4 = arith.constant 0 : index
    %3 = vector.load %arg5[%c0_3, %c0_4] : memref<1x128xf32, #tpu.memory_space<vmem>>, vector<1x128xf32>
    %4 = vector.broadcast %3 : vector<1x128xf32> to vector<128x128xf32>
    %5 = arith.addf %2, %4 : vector<128x128xf32>
    %c0_5 = arith.constant 0 : index
    %c0_6 = arith.constant 0 : index
    %6 = vector.load %arg6[%c0_5, %c0_6] : memref<128x128xf32, #tpu.memory_space<vmem>>, vector<128x128xf32>
    tpu.vector_store %arg6[%c0_5, %c0_6], %5 {strides = array<i32>} : memref<128x128xf32, #tpu.memory_space<vmem>>, vector<128x128xf32>,
    return
  }
  func.func @transform_0(%arg0: i32, %arg1: i32, %arg2: i32) -> (i32, i32) {
    %c0_i32 = arith.constant 0 : i32
    return %arg0, %arg2 : i32, i32
  }
  func.func @transform_1(%arg0: i32, %arg1: i32, %arg2: i32) -> (i32, i32) {
    %c0_i32 = arith.constant 0 : i32
    return %arg2, %arg1 : i32, i32
  }
  func.func @transform_2(%arg0: i32, %arg1: i32, %arg2: i32) -> (i32, i32) {
    %c0_i32 = arith.constant 0 : i32
    %c0_i32_0 = arith.constant 0 : i32
    return %c0_i32, %arg1 : i32, i32
  }
  func.func @transform_3(%arg0: i32, %arg1: i32, %arg2: i32) -> (i32, i32) {
    %c0_i32 = arith.constant 0 : i32
    return %arg0, %arg1 : i32, i32
  }
}

</mosaic_0001>

<llo_original>
// kernel: graph_encoder_forward.6
$region0: #{graph_encoder_forward.6}
  #allocation0 [shape = 'u32[]', space=smem, size = 0x4, offset = 0x4, fixed_abs, tag = 'smem constant byte address 0x4 - core index']
  #allocation1 [shape = 'u32[72,128]{1,0:T(1,128)}', space=vmem, size = 0x9000, scoped, tag = 'internal scratch']
  %s0 = inlined_call_operand.vmem [shape: bf16[256,128], index: 0, kind: input, shape index: {}]
  %s1 = inlined_call_operand.vmem [shape: bf16[128,128], index: 1, kind: input, shape index: {}]
  %s2 = inlined_call_operand.vmem [shape: f32[1,128], index: 2, kind: input, shape index: {}]
  %s3 = inlined_call_operand.vmem [shape: f32[256,128], index: 3, kind: output, shape index: {}]
  %s4 = sld [smem:[#allocation0]]
  $region45: #{graph_encoder_forward.6} parent=0
    _
  %s6 = ssub.s32 1, %s4
  %s7 = scalar_select 0, %s6, %s4
  loop: start=0, step=1, limit=4
  $region2: #{graph_encoder_forward.6} parent=0 // loop_pre_header
    _
  $region3: #{graph_encoder_forward.6} parent=0 // loop_header
    %s9 = sphi 0, %s13
    %p10 = scmp.ge.s32.totalorder %s9, 4
    %s16 = sphi 0, %s35
    %s17 = sphi 0, %s31
    %s18 = sphi 0, %s27
    %s19 = sphi 0, %s16
    %s20 = sphi 0, %s17
    %s21 = sphi 0, %s18
    %s22 = sphi 0, %s19
    %s23 = sphi 0, %s20
    %s24 = sphi 0, %s21
    %s40 = sphi 0, %s42
    %s43 = sphi 0, %s40
    %s44 = sphi 0, %s43
    %s60 = sphi 0, %s44
    %s68 = sphi 0, %s70
    %s71 = sphi 0, %s68
    %s72 = sphi 0, %s71
    %s88 = sphi 0, %s72
    %s94 = sphi 0, %s96
    %s97 = sphi 0, %s94
    %s98 = sphi 0, %s97
    %s114 = sphi 0, %s98
    %s122 = sphi 0, %s124
    %s125 = sphi 0, %s122
    %s126 = sphi 0, %s125
    %s142 = sphi 0, %s126
  $region4: #{graph_encoder_forward.6} parent=0 // loop_header_branch
    %12 = sbr.rel (%p10) target = $region8
  $region5: #{graph_encoder_forward.6} parent=0 // loop_body
    %s14 = ssub.s32 %s9, 1
    %s15 = ssub.s32 %s9, 2
    %s25 = sadd.s32 1, %s18
    %p26 = scmp.ge.s32.totalorder %s25, 1
    %s27 = scalar_select %p26, 0, %s25
    %s28 = sadd.s32 1, %s17
    %s29 = scalar_select %p26, %s28, %s17
    %p30 = scmp.ge.s32.totalorder %s29, 1
    %s31 = scalar_select %p30, 0, %s29
    %s32 = sadd.s32 1, %s16
    %s33 = scalar_select %p30, %s32, %s16
    %p34 = scmp.ge.s32.totalorder %s33, 2
    %s35 = scalar_select %p34, 0, %s33
    %s36 = ssub.s32 %s16, %s35
    %s37 = ssub.s32 %s18, %s27
    %s38 = sor.u32 %s36, %s37
    %p39 = scmp.eq.s32.totalorder %s38, 0
    %s41 = sadd.s32 %s40, 1
    %s42 = scalar_select %p39, %s40, %s41
    %p45 = pneg %p39
    %p46 = scmp.eq.s32.totalorder %s9, 1
    %p47 = por %p45, %p46
    %p48 = scmp.ne.s32.totalorder %s40, %s43
    %p49 = scmp.eq.s32.totalorder %s9, 0
    %p50 = por %p48, %p49
    %p51 = scmp.ne.s32.totalorder %s40, %s43
    %p52 = scmp.eq.s32.totalorder %s14, 1
    %p53 = por %p51, %p52
    %p54 = scmp.ne.s32.totalorder %s43, %s44
    %p55 = scmp.eq.s32.totalorder %s14, 0
    %p56 = por %p54, %p55
    %p57 = scmp.ne.s32.totalorder %s43, %s44
    %p58 = scmp.eq.s32.totalorder %s15, 1
    %p59 = por %p57, %p58
    %p61 = scmp.ne.s32.totalorder %s44, %s60
    %p62 = scmp.eq.s32.totalorder %s15, 0
    %p63 = por %p61, %p62
    %s64 = ssub.s32 %s18, %s27
    %s65 = ssub.s32 %s17, %s31
    %s66 = sor.u32 %s64, %s65
    %p67 = scmp.eq.s32.totalorder %s66, 0
    %s69 = sadd.s32 %s68, 1
    %s70 = scalar_select %p67, %s68, %s69
    %p73 = pneg %p67
    %p74 = scmp.eq.s32.totalorder %s9, 1
    %p75 = por %p73, %p74
    %p76 = scmp.ne.s32.totalorder %s68, %s71
    %p77 = scmp.eq.s32.totalorder %s9, 0
    %p78 = por %p76, %p77
    %p79 = scmp.ne.s32.totalorder %s68, %s71
    %p80 = scmp.eq.s32.totalorder %s14, 1
    %p81 = por %p79, %p80
    %p82 = scmp.ne.s32.totalorder %s71, %s72
    %p83 = scmp.eq.s32.totalorder %s14, 0
    %p84 = por %p82, %p83
    %p85 = scmp.ne.s32.totalorder %s71, %s72
    %p86 = scmp.eq.s32.totalorder %s15, 1
    %p87 = por %p85, %p86
    %p89 = scmp.ne.s32.totalorder %s72, %s88
    %p90 = scmp.eq.s32.totalorder %s15, 0
    %p91 = por %p89, %p90
    %s92 = ssub.s32 %s17, %s31
    %p93 = scmp.eq.s32.totalorder %s92, 0
    %s95 = sadd.s32 %s94, 1
    %s96 = scalar_select %p93, %s94, %s95
    %p99 = pneg %p93
    %p100 = scmp.eq.s32.totalorder %s9, 1
    %p101 = por %p99, %p100
    %p102 = scmp.ne.s32.totalorder %s94, %s97
    %p103 = scmp.eq.s32.totalorder %s9, 0
    %p104 = por %p102, %p103
    %p105 = scmp.ne.s32.totalorder %s94, %s97
    %p106 = scmp.eq.s32.totalorder %s14, 1
    %p107 = por %p105, %p106
    %p108 = scmp.ne.s32.totalorder %s97, %s98
    %p109 = scmp.eq.s32.totalorder %s14, 0
    %p110 = por %p108, %p109
    %p111 = scmp.ne.s32.totalorder %s97, %s98
    %p112 = scmp.eq.s32.totalorder %s15, 1
    %p113 = por %p111, %p112
    %p115 = scmp.ne.s32.totalorder %s98, %s114
    %p116 = scmp.eq.s32.totalorder %s15, 0
    %p117 = por %p115, %p116
    %s118 = ssub.s32 %s16, %s35
    %s119 = ssub.s32 %s17, %s31
    %s120 = sor.u32 %s118, %s119
    %p121 = scmp.eq.s32.totalorder %s120, 0
    %s123 = sadd.s32 %s122, 1
    %s124 = scalar_select %p121, %s122, %s123
    %p127 = pneg %p121
    %p128 = scmp.eq.s32.totalorder %s9, 1
    %p129 = por %p127, %p128
    %p130 = scmp.ne.s32.totalorder %s122, %s125
    %p131 = scmp.eq.s32.totalorder %s9, 0
    %p132 = por %p130, %p131
    %p133 = scmp.ne.s32.totalorder %s122, %s125
    %p134 = scmp.eq.s32.totalorder %s14, 1
    %p135 = por %p133, %p134
    %p136 = scmp.ne.s32.totalorder %s125, %s126
    %p137 = scmp.eq.s32.totalorder %s14, 0
    %p138 = por %p136, %p137
    %p139 = scmp.ne.s32.totalorder %s125, %s126
    %p140 = scmp.eq.s32.totalorder %s15, 1
    %p141 = por %p139, %p140
    %p143 = scmp.ne.s32.totalorder %s126, %s142
    %p144 = scmp.eq.s32.totalorder %s15, 0
    %p145 = por %p143, %p144
    %p146 = scmp.le.s32.totalorder 1, %s9
    %p147 = scmp.lt.s32.totalorder %s9, 3
    %p148 = pnand %p146, %p147
    %p149 = pneg %p148
    // Predicated region
    $region9: #{graph_encoder_forward.6} parent=5 // pred_check
      _
    $region10: #{graph_encoder_forward.6} parent=5 // pred_check_branch
      %151 = sbr.rel (%p148) target = $region12
    $region11: #{graph_encoder_forward.6} parent=5 // pred_region
      %s152 = ssub.s32 %s9, 1
      // Predicated region
      $region13: #{graph_encoder_forward.6} parent=11 // pred_check
        %p153 = pneg %p84
      $region14: #{graph_encoder_forward.6} parent=11 // pred_check_branch
        %155 = sbr.rel (%p153) target = $region16
      $region15: #{graph_encoder_forward.6} parent=11 // pred_region
        %s156 = smul.u32 16, %s21
        %p157 = scmp.lt.s32.totalorder %s156, 15
        %s158 = scalar_select %p157, %s156, 15
        %p159 = scmp.lt.s32.totalorder %s20, 0
        %s160 = scalar_select %p159, %s20, 0
        %s161 = sadd.s32 %s160, %s158
        %s162 = smul.addr %s161, 4
        %s163 = scalar_lea.vmem %s1, %s162
        %s164 = smul.u32 16, %s21
      $region16: #{graph_encoder_forward.6} parent=11 // pred_fallthru
        _
      // Predicated region
      $region17: #{graph_encoder_forward.6} parent=11 // pred_check
        %p165 = pneg %p110
      $region18: #{graph_encoder_forward.6} parent=11 // pred_check_branch
        %167 = sbr.rel (%p165) target = $region20
      $region19: #{graph_encoder_forward.6} parent=11 // pred_region
        %p168 = scmp.lt.s32.totalorder %s20, 0
        %s169 = scalar_select %p168, %s20, 0
        %s170 = scalar_lea.vmem %s2, %s169
      $region20: #{graph_encoder_forward.6} parent=11 // pred_fallthru
        _
    $region12: #{graph_encoder_forward.6} parent=5 // pred_fallthru
      _
    %p171 = scmp.lt.s32.totalorder %s9, 2
    // Predicated region
    $region21: #{graph_encoder_forward.6} parent=5 // pred_check
      %p172 = pneg %p171
    $region22: #{graph_encoder_forward.6} parent=5 // pred_check_branch
      %174 = sbr.rel (%p172) target = $region24
    $region23: #{graph_encoder_forward.6} parent=5 // pred_region
      // Predicated region
      $region25: #{graph_encoder_forward.6} parent=23 // pred_check
        %p175 = pneg %p50
      $region26: #{graph_encoder_forward.6} parent=23 // pred_check_branch
        %177 = sbr.rel (%p175) target = $region28
      $region27: #{graph_encoder_forward.6} parent=23 // pred_region
        %s178 = smul.u32 16, %s16
        %p179 = scmp.lt.s32.totalorder %s178, 31
        %s180 = scalar_select %p179, %s178, 31
        %p181 = scmp.lt.s32.totalorder %s18, 0
        %s182 = scalar_select %p181, %s18, 0
        %s183 = sadd.s32 %s182, %s180
        %s184 = smul.addr %s183, 4
        %s185 = scalar_lea.vmem %s0, %s184
        %s186 = smul.u32 16, %s16
      $region28: #{graph_encoder_forward.6} parent=23 // pred_fallthru
        _
    $region24: #{graph_encoder_forward.6} parent=5 // pred_fallthru
      _
    %p187 = scmp.le.s32.totalorder 1, %s9
    %p188 = scmp.lt.s32.totalorder %s9, 3
    %p189 = pnand %p187, %p188
    %p190 = pneg %p189
    // Predicated region
    $region29: #{graph_encoder_forward.6} parent=5 // pred_check
      _
    $region30: #{graph_encoder_forward.6} parent=5 // pred_check_branch
      %192 = sbr.rel (%p189) target = $region32
    $region31: #{graph_encoder_forward.6} parent=5 // pred_region
      %s193 = ssub.s32 %s9, 1
      %s194 = smul.u32 16, %s19
      %p195 = scmp.lt.s32.totalorder %s194, 31
      %s196 = scalar_select %p195, %s194, 31
      %p197 = scmp.lt.s32.totalorder %s21, 0
      %s198 = scalar_select %p197, %s21, 0
      %s199 = sadd.s32 %s198, %s196
      %s200 = smul.addr %s199, 4
      %s201 = scalar_lea.vmem %s0, %s200
      %p202 = pneg %p56
      %p203 = pneg %p53
      %s204 = smul.u32 16, %s21
      %p205 = scmp.lt.s32.totalorder %s204, 15
      %s206 = scalar_select %p205, %s204, 15
      %p207 = scmp.lt.s32.totalorder %s20, 0
      %s208 = scalar_select %p207, %s20, 0
      %s209 = sadd.s32 %s208, %s206
      %s210 = smul.addr %s209, 4
      %s211 = scalar_lea.vmem %s1, %s210
      %p212 = pneg %p84
      %p213 = pneg %p81
      %p214 = scmp.lt.s32.totalorder %s20, 0
      %s215 = scalar_select %p214, %s20, 0
      %s216 = scalar_lea.vmem %s2, %s215
      %p217 = pneg %p110
      %p218 = pneg %p107
      %p219 = pneg %p138
      %p220 = pneg %p135
      %s221 = smul.u32 16, %s19
      %p222 = scmp.lt.s32.totalorder %s221, 31
      %s223 = scalar_select %p222, %s221, 31
      %p224 = scmp.lt.s32.totalorder %s20, 0
      %s225 = scalar_select %p224, %s20, 0
      %s226 = sadd.s32 %s225, %s223
      %s227 = smul.addr %s226, 8
      %s228 = scalar_lea.vmem %s3, %s227
      %s229 = smul.u32 16, %s19
      %p230 = scmp.lt.s32.totalorder %s229, 31
      %s231 = scalar_select %p230, %s229, 31
      %p232 = scmp.lt.s32.totalorder %s21, 0
      %s233 = scalar_select %p232, %s21, 0
      %s234 = sadd.s32 %s233, %s231
      %s235 = smul.addr %s234, 4
      %s236 = scalar_lea.vmem %s0, %s235
      %s237 = smul.u32 16, %s19
      %s238 = smul.u32 16, %s21
      %p239 = scmp.lt.s32.totalorder %s238, 15
      %s240 = scalar_select %p239, %s238, 15
      %p241 = scmp.lt.s32.totalorder %s20, 0
      %s242 = scalar_select %p241, %s20, 0
      %s243 = sadd.s32 %s242, %s240
      %s244 = smul.addr %s243, 4
      %s245 = scalar_lea.vmem %s1, %s244
      %s246 = smul.u32 16, %s21
      %p247 = scmp.lt.s32.totalorder %s20, 0
      %s248 = scalar_select %p247, %s20, 0
      %s249 = scalar_lea.vmem %s2, %s248
      %s250 = smul.u32 16, %s19
      %p251 = scmp.lt.s32.totalorder %s250, 31
      %s252 = scalar_select %p251, %s250, 31
      %p253 = scmp.lt.s32.totalorder %s20, 0
      %s254 = scalar_select %p253, %s20, 0
      %s255 = sadd.s32 %s254, %s252
      %s256 = smul.addr %s255, 8
      %s257 = scalar_lea.vmem %s3, %s256
      %s258 = smul.u32 16, %s19
      %v259 = vld [vmem:[%s236] sm:$0xf]
      %v260 = vld [vmem:[%s236 + $0x4] sm:$0xf]
      %v261 = vld [vmem:[%s236 + $0x8] sm:$0xf]
      %v262 = vld [vmem:[%s236 + $0xc] sm:$0xf]
      %v263 = vld [vmem:[%s236 + $0x10] sm:$0xf]
      %v264 = vld [vmem:[%s236 + $0x14] sm:$0xf]
      %v265 = vld [vmem:[%s236 + $0x18] sm:$0xf]
      %v266 = vld [vmem:[%s236 + $0x1c] sm:$0xf]
      %v267 = vld [vmem:[%s236 + $0x20] sm:$0xf]
      %v268 = vld [vmem:[%s236 + $0x24] sm:$0xf]
      %v269 = vld [vmem:[%s236 + $0x28] sm:$0xf]
      %v270 = vld [vmem:[%s236 + $0x2c] sm:$0xf]
      %v271 = vld [vmem:[%s236 + $0x30] sm:$0xf]
      %v272 = vld [vmem:[%s236 + $0x34] sm:$0xf]
      %v273 = vld [vmem:[%s236 + $0x38] sm:$0xf]
      %v274 = vld [vmem:[%s236 + $0x3c] sm:$0xf]
      %v275 = vld [vmem:[%s245] sm:$0xf]
      %v276 = vld [vmem:[%s245 + $0x4] sm:$0xf]
      %v277 = vld [vmem:[%s245 + $0x8] sm:$0xf]
      %v278 = vld [vmem:[%s245 + $0xc] sm:$0xf]
      %v279 = vld [vmem:[%s245 + $0x10] sm:$0xf]
      %v280 = vld [vmem:[%s245 + $0x14] sm:$0xf]
      %v281 = vld [vmem:[%s245 + $0x18] sm:$0xf]
      %v282 = vld [vmem:[%s245 + $0x1c] sm:$0xf]
      %v283 = vld [vmem:[%s245 + $0x20] sm:$0xf]
      %v284 = vld [vmem:[%s245 + $0x24] sm:$0xf]
      %v285 = vld [vmem:[%s245 + $0x28] sm:$0xf]
      %v286 = vld [vmem:[%s245 + $0x2c] sm:$0xf]
      %v287 = vld [vmem:[%s245 + $0x30] sm:$0xf]
      %v288 = vld [vmem:[%s245 + $0x34] sm:$0xf]
      %v289 = vld [vmem:[%s245 + $0x38] sm:$0xf]
      %v290 = vld [vmem:[%s245 + $0x3c] sm:$0xf]
      %v291 = vld [vmem:[%s249] sm:$0x1]
      %v293 = vperm.slane %v291, 0
      %v311 = vunpack.c.l.b16 %v259
      %v312 = vunpack.c.l.b16 %v260
      %v313 = vunpack.c.l.b16 %v261
      %v314 = vunpack.c.l.b16 %v262
      %v315 = vunpack.c.l.b16 %v263
      %v316 = vunpack.c.l.b16 %v264
      %v317 = vunpack.c.l.b16 %v265
      %v318 = vunpack.c.l.b16 %v266
      %v319 = vunpack.c.l.b16 %v267
      %v320 = vunpack.c.l.b16 %v268
      %v321 = vunpack.c.l.b16 %v269
      %v322 = vunpack.c.l.b16 %v270
      %v323 = vunpack.c.l.b16 %v271
      %v324 = vunpack.c.l.b16 %v272
      %v325 = vunpack.c.l.b16 %v273
      %v326 = vunpack.c.l.b16 %v274
      %v327 = vpack.c.b16 %v312, %v311
      %v328 = vpack.c.b16 %v314, %v313
      %v329 = vpack.c.b16 %v316, %v315
      %v330 = vpack.c.b16 %v318, %v317
      %v331 = vpack.c.b16 %v320, %v319
      %v332 = vpack.c.b16 %v322, %v321
      %v333 = vpack.c.b16 %v324, %v323
      %v334 = vpack.c.b16 %v326, %v325
      %v359 = vunpack.c.l.b16 %v275
      %v360 = vunpack.c.l.b16 %v276
      %v361 = vunpack.c.l.b16 %v277
      %v362 = vunpack.c.l.b16 %v278
      %v363 = vunpack.c.l.b16 %v279
      %v364 = vunpack.c.l.b16 %v280
      %v365 = vunpack.c.l.b16 %v281
      %v366 = vunpack.c.l.b16 %v282
      %v367 = vunpack.c.l.b16 %v283
      %v368 = vunpack.c.l.b16 %v284
      %v369 = vunpack.c.l.b16 %v285
      %v370 = vunpack.c.l.b16 %v286
      %v371 = vunpack.c.l.b16 %v287
      %v372 = vunpack.c.l.b16 %v288
      %v373 = vunpack.c.l.b16 %v289
      %v374 = vunpack.c.l.b16 %v290
      %v375 = vpack.c.b16 %v360, %v359
      %v376 = vpack.c.b16 %v362, %v361
      %v377 = vpack.c.b16 %v364, %v363
      %v378 = vpack.c.b16 %v366, %v365
      %v379 = vpack.c.b16 %v368, %v367
      %v380 = vpack.c.b16 %v370, %v369
      %v381 = vpack.c.b16 %v372, %v371
      %v382 = vpack.c.b16 %v374, %v373
      %391 = vmatpush.bf16.msra.mxu0 %v382
      %392 = vmatpush.bf16.msra.mxu0 %v381
      %393 = vmatpush.bf16.msra.mxu0 %v380
      %394 = vmatpush.bf16.msra.mxu0 %v379
      %395 = vmatpush.bf16.msra.mxu0 %v378
      %396 = vmatpush.bf16.msra.mxu0 %v377
      %397 = vmatpush.bf16.msra.mxu0 %v376
      %398 = vmatpush.bf16.msra.mxu0 %v375
      %399 = vmatmul.bf16.gmra.mxu0 %v327
      %v400 = vpop.f32.mrf.mxu0
      %v401 = vadd.f32 %v293, %v400
      %v402 = vpop.f32.mrf.mxu0
      %v403 = vadd.f32 %v293, %v402
      %404 = vmatmul.bf16.gmra.mxu0 %v328
      %v405 = vpop.f32.mrf.mxu0
      %v406 = vadd.f32 %v293, %v405
      %v407 = vpop.f32.mrf.mxu0
      %v408 = vadd.f32 %v293, %v407
      %409 = vmatmul.bf16.gmra.mxu0 %v329
      %v410 = vpop.f32.mrf.mxu0
      %v411 = vadd.f32 %v293, %v410
      %v412 = vpop.f32.mrf.mxu0
      %v413 = vadd.f32 %v293, %v412
      %414 = vmatmul.bf16.gmra.mxu0 %v330
      %v415 = vpop.f32.mrf.mxu0
      %v416 = vadd.f32 %v293, %v415
      %v417 = vpop.f32.mrf.mxu0
      %v418 = vadd.f32 %v293, %v417
      %419 = vmatmul.bf16.gmra.mxu0 %v331
      %v420 = vpop.f32.mrf.mxu0
      %v421 = vadd.f32 %v293, %v420
      %v422 = vpop.f32.mrf.mxu0
      %v423 = vadd.f32 %v293, %v422
      %424 = vmatmul.bf16.gmra.mxu0 %v332
      %v425 = vpop.f32.mrf.mxu0
      %v426 = vadd.f32 %v293, %v425
      %v427 = vpop.f32.mrf.mxu0
      %v428 = vadd.f32 %v293, %v427
      %429 = vmatmul.bf16.gmra.mxu0 %v333
      %v430 = vpop.f32.mrf.mxu0
      %v431 = vadd.f32 %v293, %v430
      %v432 = vpop.f32.mrf.mxu0
      %v433 = vadd.f32 %v293, %v432
      %434 = vmatmul.bf16.gmra.mxu0 %v334
      %v435 = vpop.f32.mrf.mxu0
      %v436 = vadd.f32 %v293, %v435
      %v437 = vpop.f32.mrf.mxu0
      %v438 = vadd.f32 %v293, %v437
      %439 = vdwg.mxu0
      %440 = vst [vmem:[%s257] sm:$0xff] %v401
      %441 = vst [vmem:[%s257 + $0x8] sm:$0xff] %v403
      %442 = vst [vmem:[%s257 + $0x10] sm:$0xff] %v406
      %443 = vst [vmem:[%s257 + $0x18] sm:$0xff] %v408
      %444 = vst [vmem:[%s257 + $0x20] sm:$0xff] %v411
      %445 = vst [vmem:[%s257 + $0x28] sm:$0xff] %v413
      %446 = vst [vmem:[%s257 + $0x30] sm:$0xff] %v416
      %447 = vst [vmem:[%s257 + $0x38] sm:$0xff] %v418
      %448 = vst [vmem:[%s257 + $0x40] sm:$0xff] %v421
      %449 = vst [vmem:[%s257 + $0x48] sm:$0xff] %v423
      %450 = vst [vmem:[%s257 + $0x50] sm:$0xff] %v426
      %451 = vst [vmem:[%s257 + $0x58] sm:$0xff] %v428
      %452 = vst [vmem:[%s257 + $0x60] sm:$0xff] %v431
      %453 = vst [vmem:[%s257 + $0x68] sm:$0xff] %v433
      %454 = vst [vmem:[%s257 + $0x70] sm:$0xff] %v436
      %455 = vst [vmem:[%s257 + $0x78] sm:$0xff] %v438
      %s456 = smul.u32 16, %s19
      %p457 = scmp.lt.s32.totalorder %s456, 31
      %s458 = scalar_select %p457, %s456, 31
      %p459 = scmp.lt.s32.totalorder %s20, 0
      %s460 = scalar_select %p459, %s20, 0
      %s461 = sadd.s32 %s460, %s458
      %s462 = smul.addr %s461, 8
      %s463 = scalar_lea.vmem %s3, %s462
      // Predicated region
      $region33: #{graph_encoder_forward.6} parent=31 // pred_check
        %p464 = pneg %p135
      $region34: #{graph_encoder_forward.6} parent=31 // pred_check_branch
        %466 = sbr.rel (%p464) target = $region36
      $region35: #{graph_encoder_forward.6} parent=31 // pred_region
        %s467 = smul.u32 16, %s19
      $region36: #{graph_encoder_forward.6} parent=31 // pred_fallthru
        _
    $region32: #{graph_encoder_forward.6} parent=5 // pred_fallthru
      _
    %p468 = scmp.le.s32.totalorder 2, %s9
    // Predicated region
    $region37: #{graph_encoder_forward.6} parent=5 // pred_check
      %p469 = pneg %p468
    $region38: #{graph_encoder_forward.6} parent=5 // pred_check_branch
      %471 = sbr.rel (%p469) target = $region40
    $region39: #{graph_encoder_forward.6} parent=5 // pred_region
      %s472 = ssub.s32 %s9, 2
      // Predicated region
      $region41: #{graph_encoder_forward.6} parent=39 // pred_check
        %p473 = pneg %p141
      $region42: #{graph_encoder_forward.6} parent=39 // pred_check_branch
        %475 = sbr.rel (%p473) target = $region44
      $region43: #{graph_encoder_forward.6} parent=39 // pred_region
        %s476 = smul.u32 16, %s22
        %p477 = scmp.lt.s32.totalorder %s476, 31
        %s478 = scalar_select %p477, %s476, 31
        %p479 = scmp.lt.s32.totalorder %s23, 0
        %s480 = scalar_select %p479, %s23, 0
        %s481 = sadd.s32 %s480, %s478
        %s482 = smul.addr %s481, 8
        %s483 = scalar_lea.vmem %s3, %s482
      $region44: #{graph_encoder_forward.6} parent=39 // pred_fallthru
        _
    $region40: #{graph_encoder_forward.6} parent=5 // pred_fallthru
      _
  $region6: #{graph_encoder_forward.6} parent=0 // loop_footer
    %s13 = sadd.s32 1, %s9
  $region7: #{graph_encoder_forward.6} parent=0 // loop_footer_branch
    %8 = sbr.rel target = $region3
  $region8: #{graph_encoder_forward.6} parent=0 // loop_exit
    _

// kernel: graph_encoder_forward.10
$region0: #{graph_encoder_forward.10}
  #allocation0 [shape = 'u32[]', space=smem, size = 0x4, offset = 0x4, fixed_abs, tag = 'smem constant byte address 0x4 - core index']
  #allocation1 [shape = 'u32[72,128]{1,0:T(1,128)}', space=vmem, size = 0x9000, scoped, tag = 'internal scratch']
  %s0 = inlined_call_operand.vmem [shape: bf16[256,128], index: 0, kind: input, shape index: {}]
  %s1 = inlined_call_operand.vmem [shape: bf16[128,128], index: 1, kind: input, shape index: {}]
  %s2 = inlined_call_operand.vmem [shape: f32[1,128], index: 2, kind: input, shape index: {}]
  %s3 = inlined_call_operand.vmem [shape: f32[256,128], index: 3, kind: output, shape index: {}]
  %s4 = sld [smem:[#allocation0]]
  $region45: #{graph_encoder_forward.10} parent=0
    _
  %s6 = ssub.s32 1, %s4
  %s7 = scalar_select 0, %s6, %s4
  loop: start=0, step=1, limit=4
  $region2: #{graph_encoder_forward.10} parent=0 // loop_pre_header
    _
  $region3: #{graph_encoder_forward.10} parent=0 // loop_header
    %s9 = sphi 0, %s13
    %p10 = scmp.ge.s32.totalorder %s9, 4
    %s16 = sphi 0, %s35
    %s17 = sphi 0, %s31
    %s18 = sphi 0, %s27
    %s19 = sphi 0, %s16
    %s20 = sphi 0, %s17
    %s21 = sphi 0, %s18
    %s22 = sphi 0, %s19
    %s23 = sphi 0, %s20
    %s24 = sphi 0, %s21
    %s40 = sphi 0, %s42
    %s43 = sphi 0, %s40
    %s44 = sphi 0, %s43
    %s60 = sphi 0, %s44
    %s68 = sphi 0, %s70
    %s71 = sphi 0, %s68
    %s72 = sphi 0, %s71
    %s88 = sphi 0, %s72
    %s94 = sphi 0, %s96
    %s97 = sphi 0, %s94
    %s98 = sphi 0, %s97
    %s114 = sphi 0, %s98
    %s122 = sphi 0, %s124
    %s125 = sphi 0, %s122
    %s126 = sphi 0, %s125
    %s142 = sphi 0, %s126
  $region4: #{graph_encoder_forward.10} parent=0 // loop_header_branch
    %12 = sbr.rel (%p10) target = $region8
  $region5: #{graph_encoder_forward.10} parent=0 // loop_body
    %s14 = ssub.s32 %s9, 1
    %s15 = ssub.s32 %s9, 2
    %s25 = sadd.s32 1, %s18
    %p26 = scmp.ge.s32.totalorder %s25, 1
    %s27 = scalar_select %p26, 0, %s25
    %s28 = sadd.s32 1, %s17
    %s29 = scalar_select %p26, %s28, %s17
    %p30 = scmp.ge.s32.totalorder %s29, 1
    %s31 = scalar_select %p30, 0, %s29
    %s32 = sadd.s32 1, %s16
    %s33 = scalar_select %p30, %s32, %s16
    %p34 = scmp.ge.s32.totalorder %s33, 2
    %s35 = scalar_select %p34, 0, %s33
    %s36 = ssub.s32 %s16, %s35
    %s37 = ssub.s32 %s18, %s27
    %s38 = sor.u32 %s36, %s37
    %p39 = scmp.eq.s32.totalorder %s38, 0
    %s41 = sadd.s32 %s40, 1
    %s42 = scalar_select %p39, %s40, %s41
    %p45 = pneg %p39
    %p46 = scmp.eq.s32.totalorder %s9, 1
    %p47 = por %p45, %p46
    %p48 = scmp.ne.s32.totalorder %s40, %s43
    %p49 = scmp.eq.s32.totalorder %s9, 0
    %p50 = por %p48, %p49
    %p51 = scmp.ne.s32.totalorder %s40, %s43
    %p52 = scmp.eq.s32.totalorder %s14, 1
    %p53 = por %p51, %p52
    %p54 = scmp.ne.s32.totalorder %s43, %s44
    %p55 = scmp.eq.s32.totalorder %s14, 0
    %p56 = por %p54, %p55
    %p57 = scmp.ne.s32.totalorder %s43, %s44
    %p58 = scmp.eq.s32.totalorder %s15, 1
    %p59 = por %p57, %p58
    %p61 = scmp.ne.s32.totalorder %s44, %s60
    %p62 = scmp.eq.s32.totalorder %s15, 0
    %p63 = por %p61, %p62
    %s64 = ssub.s32 %s18, %s27
    %s65 = ssub.s32 %s17, %s31
    %s66 = sor.u32 %s64, %s65
    %p67 = scmp.eq.s32.totalorder %s66, 0
    %s69 = sadd.s32 %s68, 1
    %s70 = scalar_select %p67, %s68, %s69
    %p73 = pneg %p67
    %p74 = scmp.eq.s32.totalorder %s9, 1
    %p75 = por %p73, %p74
    %p76 = scmp.ne.s32.totalorder %s68, %s71
    %p77 = scmp.eq.s32.totalorder %s9, 0
    %p78 = por %p76, %p77
    %p79 = scmp.ne.s32.totalorder %s68, %s71
    %p80 = scmp.eq.s32.totalorder %s14, 1
    %p81 = por %p79, %p80
    %p82 = scmp.ne.s32.totalorder %s71, %s72
    %p83 = scmp.eq.s32.totalorder %s14, 0
    %p84 = por %p82, %p83
    %p85 = scmp.ne.s32.totalorder %s71, %s72
    %p86 = scmp.eq.s32.totalorder %s15, 1
    %p87 = por %p85, %p86
    %p89 = scmp.ne.s32.totalorder %s72, %s88
    %p90 = scmp.eq.s32.totalorder %s15, 0
    %p91 = por %p89, %p90
    %s92 = ssub.s32 %s17, %s31
    %p93 = scmp.eq.s32.totalorder %s92, 0
    %s95 = sadd.s32 %s94, 1
    %s96 = scalar_select %p93, %s94, %s95
    %p99 = pneg %p93
    %p100 = scmp.eq.s32.totalorder %s9, 1
    %p101 = por %p99, %p100
    %p102 = scmp.ne.s32.totalorder %s94, %s97
    %p103 = scmp.eq.s32.totalorder %s9, 0
    %p104 = por %p102, %p103
    %p105 = scmp.ne.s32.totalorder %s94, %s97
    %p106 = scmp.eq.s32.totalorder %s14, 1
    %p107 = por %p105, %p106
    %p108 = scmp.ne.s32.totalorder %s97, %s98
    %p109 = scmp.eq.s32.totalorder %s14, 0
    %p110 = por %p108, %p109
    %p111 = scmp.ne.s32.totalorder %s97, %s98
    %p112 = scmp.eq.s32.totalorder %s15, 1
    %p113 = por %p111, %p112
    %p115 = scmp.ne.s32.totalorder %s98, %s114
    %p116 = scmp.eq.s32.totalorder %s15, 0
    %p117 = por %p115, %p116
    %s118 = ssub.s32 %s16, %s35
    %s119 = ssub.s32 %s17, %s31
    %s120 = sor.u32 %s118, %s119
    %p121 = scmp.eq.s32.totalorder %s120, 0
    %s123 = sadd.s32 %s122, 1
    %s124 = scalar_select %p121, %s122, %s123
    %p127 = pneg %p121
    %p128 = scmp.eq.s32.totalorder %s9, 1
    %p129 = por %p127, %p128
    %p130 = scmp.ne.s32.totalorder %s122, %s125
    %p131 = scmp.eq.s32.totalorder %s9, 0
    %p132 = por %p130, %p131
    %p133 = scmp.ne.s32.totalorder %s122, %s125
    %p134 = scmp.eq.s32.totalorder %s14, 1
    %p135 = por %p133, %p134
    %p136 = scmp.ne.s32.totalorder %s125, %s126
    %p137 = scmp.eq.s32.totalorder %s14, 0
    %p138 = por %p136, %p137
    %p139 = scmp.ne.s32.totalorder %s125, %s126
    %p140 = scmp.eq.s32.totalorder %s15, 1
    %p141 = por %p139, %p140
    %p143 = scmp.ne.s32.totalorder %s126, %s142
    %p144 = scmp.eq.s32.totalorder %s15, 0
    %p145 = por %p143, %p144
    %p146 = scmp.le.s32.totalorder 1, %s9
    %p147 = scmp.lt.s32.totalorder %s9, 3
    %p148 = pnand %p146, %p147
    %p149 = pneg %p148
    // Predicated region
    $region9: #{graph_encoder_forward.10} parent=5 // pred_check
      _
    $region10: #{graph_encoder_forward.10} parent=5 // pred_check_branch
      %151 = sbr.rel (%p148) target = $region12
    $region11: #{graph_encoder_forward.10} parent=5 // pred_region
      %s152 = ssub.s32 %s9, 1
      // Predicated region
      $region13: #{graph_encoder_forward.10} parent=11 // pred_check
        %p153 = pneg %p84
      $region14: #{graph_encoder_forward.10} parent=11 // pred_check_branch
        %155 = sbr.rel (%p153) target = $region16
      $region15: #{graph_encoder_forward.10} parent=11 // pred_region
        %s156 = smul.u32 16, %s21
        %p157 = scmp.lt.s32.totalorder %s156, 15
        %s158 = scalar_select %p157, %s156, 15
        %p159 = scmp.lt.s32.totalorder %s20, 0
        %s160 = scalar_select %p159, %s20, 0
        %s161 = sadd.s32 %s160, %s158
        %s162 = smul.addr %s161, 4
        %s163 = scalar_lea.vmem %s1, %s162
        %s164 = smul.u32 16, %s21
      $region16: #{graph_encoder_forward.10} parent=11 // pred_fallthru
        _
      // Predicated region
      $region17: #{graph_encoder_forward.10} parent=11 // pred_check
        %p165 = pneg %p110
      $region18: #{graph_encoder_forward.10} parent=11 // pred_check_branch
        %167 = sbr.rel (%p165) target = $region20
      $region19: #{graph_encoder_forward.10} parent=11 // pred_region
        %p168 = scmp.lt.s32.totalorder %s20, 0
        %s169 = scalar_select %p168, %s20, 0
        %s170 = scalar_lea.vmem %s2, %s169
      $region20: #{graph_encoder_forward.10} parent=11 // pred_fallthru
        _
    $region12: #{graph_encoder_forward.10} parent=5 // pred_fallthru
      _
    %p171 = scmp.lt.s32.totalorder %s9, 2
    // Predicated region
    $region21: #{graph_encoder_forward.10} parent=5 // pred_check
      %p172 = pneg %p171
    $region22: #{graph_encoder_forward.10} parent=5 // pred_check_branch
      %174 = sbr.rel (%p172) target = $region24
    $region23: #{graph_encoder_forward.10} parent=5 // pred_region
      // Predicated region
      $region25: #{graph_encoder_forward.10} parent=23 // pred_check
        %p175 = pneg %p50
      $region26: #{graph_encoder_forward.10} parent=23 // pred_check_branch
        %177 = sbr.rel (%p175) target = $region28
      $region27: #{graph_encoder_forward.10} parent=23 // pred_region
        %s178 = smul.u32 16, %s16
        %p179 = scmp.lt.s32.totalorder %s178, 31
        %s180 = scalar_select %p179, %s178, 31
        %p181 = scmp.lt.s32.totalorder %s18, 0
        %s182 = scalar_select %p181, %s18, 0
        %s183 = sadd.s32 %s182, %s180
        %s184 = smul.addr %s183, 4
        %s185 = scalar_lea.vmem %s0, %s184
        %s186 = smul.u32 16, %s16
      $region28: #{graph_encoder_forward.10} parent=23 // pred_fallthru
        _
    $region24: #{graph_encoder_forward.10} parent=5 // pred_fallthru
      _
    %p187 = scmp.le.s32.totalorder 1, %s9
    %p188 = scmp.lt.s32.totalorder %s9, 3
    %p189 = pnand %p187, %p188
    %p190 = pneg %p189
    // Predicated region
    $region29: #{graph_encoder_forward.10} parent=5 // pred_check
      _
    $region30: #{graph_encoder_forward.10} parent=5 // pred_check_branch
      %192 = sbr.rel (%p189) target = $region32
    $region31: #{graph_encoder_forward.10} parent=5 // pred_region
      %s193 = ssub.s32 %s9, 1
      %s194 = smul.u32 16, %s19
      %p195 = scmp.lt.s32.totalorder %s194, 31
      %s196 = scalar_select %p195, %s194, 31
      %p197 = scmp.lt.s32.totalorder %s21, 0
      %s198 = scalar_select %p197, %s21, 0
      %s199 = sadd.s32 %s198, %s196
      %s200 = smul.addr %s199, 4
      %s201 = scalar_lea.vmem %s0, %s200
      %p202 = pneg %p56
      %p203 = pneg %p53
      %s204 = smul.u32 16, %s21
      %p205 = scmp.lt.s32.totalorder %s204, 15
      %s206 = scalar_select %p205, %s204, 15
      %p207 = scmp.lt.s32.totalorder %s20, 0
      %s208 = scalar_select %p207, %s20, 0
      %s209 = sadd.s32 %s208, %s206
      %s210 = smul.addr %s209, 4
      %s211 = scalar_lea.vmem %s1, %s210
      %p212 = pneg %p84
      %p213 = pneg %p81
      %p214 = scmp.lt.s32.totalorder %s20, 0
      %s215 = scalar_select %p214, %s20, 0
      %s216 = scalar_lea.vmem %s2, %s215
      %p217 = pneg %p110
      %p218 = pneg %p107
      %p219 = pneg %p138
      %p220 = pneg %p135
      %s221 = smul.u32 16, %s19
      %p222 = scmp.lt.s32.totalorder %s221, 31
      %s223 = scalar_select %p222, %s221, 31
      %p224 = scmp.lt.s32.totalorder %s20, 0
      %s225 = scalar_select %p224, %s20, 0
      %s226 = sadd.s32 %s225, %s223
      %s227 = smul.addr %s226, 8
      %s228 = scalar_lea.vmem %s3, %s227
      %s229 = smul.u32 16, %s19
      %p230 = scmp.lt.s32.totalorder %s229, 31
      %s231 = scalar_select %p230, %s229, 31
      %p232 = scmp.lt.s32.totalorder %s21, 0
      %s233 = scalar_select %p232, %s21, 0
      %s234 = sadd.s32 %s233, %s231
      %s235 = smul.addr %s234, 4
      %s236 = scalar_lea.vmem %s0, %s235
      %s237 = smul.u32 16, %s19
      %s238 = smul.u32 16, %s21
      %p239 = scmp.lt.s32.totalorder %s238, 15
      %s240 = scalar_select %p239, %s238, 15
      %p241 = scmp.lt.s32.totalorder %s20, 0
      %s242 = scalar_select %p241, %s20, 0
      %s243 = sadd.s32 %s242, %s240
      %s244 = smul.addr %s243, 4
      %s245 = scalar_lea.vmem %s1, %s244
      %s246 = smul.u32 16, %s21
      %p247 = scmp.lt.s32.totalorder %s20, 0
      %s248 = scalar_select %p247, %s20, 0
      %s249 = scalar_lea.vmem %s2, %s248
      %s250 = smul.u32 16, %s19
      %p251 = scmp.lt.s32.totalorder %s250, 31
      %s252 = scalar_select %p251, %s250, 31
      %p253 = scmp.lt.s32.totalorder %s20, 0
      %s254 = scalar_select %p253, %s20, 0
      %s255 = sadd.s32 %s254, %s252
      %s256 = smul.addr %s255, 8
      %s257 = scalar_lea.vmem %s3, %s256
      %s258 = smul.u32 16, %s19
      %v259 = vld [vmem:[%s236] sm:$0xf]
      %v260 = vld [vmem:[%s236 + $0x4] sm:$0xf]
      %v261 = vld [vmem:[%s236 + $0x8] sm:$0xf]
      %v262 = vld [vmem:[%s236 + $0xc] sm:$0xf]
      %v263 = vld [vmem:[%s236 + $0x10] sm:$0xf]
      %v264 = vld [vmem:[%s236 + $0x14] sm:$0xf]
      %v265 = vld [vmem:[%s236 + $0x18] sm:$0xf]
      %v266 = vld [vmem:[%s236 + $0x1c] sm:$0xf]
      %v267 = vld [vmem:[%s236 + $0x20] sm:$0xf]
      %v268 = vld [vmem:[%s236 + $0x24] sm:$0xf]
      %v269 = vld [vmem:[%s236 + $0x28] sm:$0xf]
      %v270 = vld [vmem:[%s236 + $0x2c] sm:$0xf]
      %v271 = vld [vmem:[%s236 + $0x30] sm:$0xf]
      %v272 = vld [vmem:[%s236 + $0x34] sm:$0xf]
      %v273 = vld [vmem:[%s236 + $0x38] sm:$0xf]
      %v274 = vld [vmem:[%s236 + $0x3c] sm:$0xf]
      %v275 = vld [vmem:[%s245] sm:$0xf]
      %v276 = vld [vmem:[%s245 + $0x4] sm:$0xf]
      %v277 = vld [vmem:[%s245 + $0x8] sm:$0xf]
      %v278 = vld [vmem:[%s245 + $0xc] sm:$0xf]
      %v279 = vld [vmem:[%s245 + $0x10] sm:$0xf]
      %v280 = vld [vmem:[%s245 + $0x14] sm:$0xf]
      %v281 = vld [vmem:[%s245 + $0x18] sm:$0xf]
      %v282 = vld [vmem:[%s245 + $0x1c] sm:$0xf]
      %v283 = vld [vmem:[%s245 + $0x20] sm:$0xf]
      %v284 = vld [vmem:[%s245 + $0x24] sm:$0xf]
      %v285 = vld [vmem:[%s245 + $0x28] sm:$0xf]
      %v286 = vld [vmem:[%s245 + $0x2c] sm:$0xf]
      %v287 = vld [vmem:[%s245 + $0x30] sm:$0xf]
      %v288 = vld [vmem:[%s245 + $0x34] sm:$0xf]
      %v289 = vld [vmem:[%s245 + $0x38] sm:$0xf]
      %v290 = vld [vmem:[%s245 + $0x3c] sm:$0xf]
      %v291 = vld [vmem:[%s249] sm:$0x1]
      %v293 = vperm.slane %v291, 0
      %v311 = vunpack.c.l.b16 %v259
      %v312 = vunpack.c.l.b16 %v260
      %v313 = vunpack.c.l.b16 %v261
      %v314 = vunpack.c.l.b16 %v262
      %v315 = vunpack.c.l.b16 %v263
      %v316 = vunpack.c.l.b16 %v264
      %v317 = vunpack.c.l.b16 %v265
      %v318 = vunpack.c.l.b16 %v266
      %v319 = vunpack.c.l.b16 %v267
      %v320 = vunpack.c.l.b16 %v268
      %v321 = vunpack.c.l.b16 %v269
      %v322 = vunpack.c.l.b16 %v270
      %v323 = vunpack.c.l.b16 %v271
      %v324 = vunpack.c.l.b16 %v272
      %v325 = vunpack.c.l.b16 %v273
      %v326 = vunpack.c.l.b16 %v274
      %v327 = vpack.c.b16 %v312, %v311
      %v328 = vpack.c.b16 %v314, %v313
      %v329 = vpack.c.b16 %v316, %v315
      %v330 = vpack.c.b16 %v318, %v317
      %v331 = vpack.c.b16 %v320, %v319
      %v332 = vpack.c.b16 %v322, %v321
      %v333 = vpack.c.b16 %v324, %v323
      %v334 = vpack.c.b16 %v326, %v325
      %v359 = vunpack.c.l.b16 %v275
      %v360 = vunpack.c.l.b16 %v276
      %v361 = vunpack.c.l.b16 %v277
      %v362 = vunpack.c.l.b16 %v278
      %v363 = vunpack.c.l.b16 %v279
      %v364 = vunpack.c.l.b16 %v280
      %v365 = vunpack.c.l.b16 %v281
      %v366 = vunpack.c.l.b16 %v282
      %v367 = vunpack.c.l.b16 %v283
      %v368 = vunpack.c.l.b16 %v284
      %v369 = vunpack.c.l.b16 %v285
      %v370 = vunpack.c.l.b16 %v286
      %v371 = vunpack.c.l.b16 %v287
      %v372 = vunpack.c.l.b16 %v288
      %v373 = vunpack.c.l.b16 %v289
      %v374 = vunpack.c.l.b16 %v290
      %v375 = vpack.c.b16 %v360, %v359
      %v376 = vpack.c.b16 %v362, %v361
      %v377 = vpack.c.b16 %v364, %v363
      %v378 = vpack.c.b16 %v366, %v365
      %v379 = vpack.c.b16 %v368, %v367
      %v380 = vpack.c.b16 %v370, %v369
      %v381 = vpack.c.b16 %v372, %v371
      %v382 = vpack.c.b16 %v374, %v373
      %391 = vmatpush.bf16.msra.mxu0 %v382
      %392 = vmatpush.bf16.msra.mxu0 %v381
      %393 = vmatpush.bf16.msra.mxu0 %v380
      %394 = vmatpush.bf16.msra.mxu0 %v379
      %395 = vmatpush.bf16.msra.mxu0 %v378
      %396 = vmatpush.bf16.msra.mxu0 %v377
      %397 = vmatpush.bf16.msra.mxu0 %v376
      %398 = vmatpush.bf16.msra.mxu0 %v375
      %399 = vmatmul.bf16.gmra.mxu0 %v327
      %v400 = vpop.f32.mrf.mxu0
      %v401 = vadd.f32 %v293, %v400
      %v402 = vpop.f32.mrf.mxu0
      %v403 = vadd.f32 %v293, %v402
      %404 = vmatmul.bf16.gmra.mxu0 %v328
      %v405 = vpop.f32.mrf.mxu0
      %v406 = vadd.f32 %v293, %v405
      %v407 = vpop.f32.mrf.mxu0
      %v408 = vadd.f32 %v293, %v407
      %409 = vmatmul.bf16.gmra.mxu0 %v329
      %v410 = vpop.f32.mrf.mxu0
      %v411 = vadd.f32 %v293, %v410
      %v412 = vpop.f32.mrf.mxu0
      %v413 = vadd.f32 %v293, %v412
      %414 = vmatmul.bf16.gmra.mxu0 %v330
      %v415 = vpop.f32.mrf.mxu0
      %v416 = vadd.f32 %v293, %v415
      %v417 = vpop.f32.mrf.mxu0
      %v418 = vadd.f32 %v293, %v417
      %419 = vmatmul.bf16.gmra.mxu0 %v331
      %v420 = vpop.f32.mrf.mxu0
      %v421 = vadd.f32 %v293, %v420
      %v422 = vpop.f32.mrf.mxu0
      %v423 = vadd.f32 %v293, %v422
      %424 = vmatmul.bf16.gmra.mxu0 %v332
      %v425 = vpop.f32.mrf.mxu0
      %v426 = vadd.f32 %v293, %v425
      %v427 = vpop.f32.mrf.mxu0
      %v428 = vadd.f32 %v293, %v427
      %429 = vmatmul.bf16.gmra.mxu0 %v333
      %v430 = vpop.f32.mrf.mxu0
      %v431 = vadd.f32 %v293, %v430
      %v432 = vpop.f32.mrf.mxu0
      %v433 = vadd.f32 %v293, %v432
      %434 = vmatmul.bf16.gmra.mxu0 %v334
      %v435 = vpop.f32.mrf.mxu0
      %v436 = vadd.f32 %v293, %v435
      %v437 = vpop.f32.mrf.mxu0
      %v438 = vadd.f32 %v293, %v437
      %439 = vdwg.mxu0
      %v440 = vmax.f32 %v401, 0.0
      %v441 = vmax.f32 %v403, 0.0
      %v442 = vmax.f32 %v406, 0.0
      %v443 = vmax.f32 %v408, 0.0
      %v444 = vmax.f32 %v411, 0.0
      %v445 = vmax.f32 %v413, 0.0
      %v446 = vmax.f32 %v416, 0.0
      %v447 = vmax.f32 %v418, 0.0
      %v448 = vmax.f32 %v421, 0.0
      %v449 = vmax.f32 %v423, 0.0
      %v450 = vmax.f32 %v426, 0.0
      %v451 = vmax.f32 %v428, 0.0
      %v452 = vmax.f32 %v431, 0.0
      %v453 = vmax.f32 %v433, 0.0
      %v454 = vmax.f32 %v436, 0.0
      %v455 = vmax.f32 %v438, 0.0
      %456 = vst [vmem:[%s257] sm:$0xff] %v440
      %457 = vst [vmem:[%s257 + $0x8] sm:$0xff] %v441
      %458 = vst [vmem:[%s257 + $0x10] sm:$0xff] %v442
      %459 = vst [vmem:[%s257 + $0x18] sm:$0xff] %v443
      %460 = vst [vmem:[%s257 + $0x20] sm:$0xff] %v444
      %461 = vst [vmem:[%s257 + $0x28] sm:$0xff] %v445
      %462 = vst [vmem:[%s257 + $0x30] sm:$0xff] %v446
      %463 = vst [vmem:[%s257 + $0x38] sm:$0xff] %v447
      %464 = vst [vmem:[%s257 + $0x40] sm:$0xff] %v448
      %465 = vst [vmem:[%s257 + $0x48] sm:$0xff] %v449
      %466 = vst [vmem:[%s257 + $0x50] sm:$0xff] %v450
      %467 = vst [vmem:[%s257 + $0x58] sm:$0xff] %v451
      %468 = vst [vmem:[%s257 + $0x60] sm:$0xff] %v452
      %469 = vst [vmem:[%s257 + $0x68] sm:$0xff] %v453
      %470 = vst [vmem:[%s257 + $0x70] sm:$0xff] %v454
      %471 = vst [vmem:[%s257 + $0x78] sm:$0xff] %v455
      %s472 = smul.u32 16, %s19
      %p473 = scmp.lt.s32.totalorder %s472, 31
      %s474 = scalar_select %p473, %s472, 31
      %p475 = scmp.lt.s32.totalorder %s20, 0
      %s476 = scalar_select %p475, %s20, 0
      %s477 = sadd.s32 %s476, %s474
      %s478 = smul.addr %s477, 8
      %s479 = scalar_lea.vmem %s3, %s478
      // Predicated region
      $region33: #{graph_encoder_forward.10} parent=31 // pred_check
        %p480 = pneg %p135
      $region34: #{graph_encoder_forward.10} parent=31 // pred_check_branch
        %482 = sbr.rel (%p480) target = $region36
      $region35: #{graph_encoder_forward.10} parent=31 // pred_region
        %s483 = smul.u32 16, %s19
      $region36: #{graph_encoder_forward.10} parent=31 // pred_fallthru
        _
    $region32: #{graph_encoder_forward.10} parent=5 // pred_fallthru
      _
    %p484 = scmp.le.s32.totalorder 2, %s9
    // Predicated region
    $region37: #{graph_encoder_forward.10} parent=5 // pred_check
      %p485 = pneg %p484
    $region38: #{graph_encoder_forward.10} parent=5 // pred_check_branch
      %487 = sbr.rel (%p485) target = $region40
    $region39: #{graph_encoder_forward.10} parent=5 // pred_region
      %s488 = ssub.s32 %s9, 2
      // Predicated region
      $region41: #{graph_encoder_forward.10} parent=39 // pred_check
        %p489 = pneg %p141
      $region42: #{graph_encoder_forward.10} parent=39 // pred_check_branch
        %491 = sbr.rel (%p489) target = $region44
      $region43: #{graph_encoder_forward.10} parent=39 // pred_region
        %s492 = smul.u32 16, %s22
        %p493 = scmp.lt.s32.totalorder %s492, 31
        %s494 = scalar_select %p493, %s492, 31
        %p495 = scmp.lt.s32.totalorder %s23, 0
        %s496 = scalar_select %p495, %s23, 0
        %s497 = sadd.s32 %s496, %s494
        %s498 = smul.addr %s497, 8
        %s499 = scalar_lea.vmem %s3, %s498
      $region44: #{graph_encoder_forward.10} parent=39 // pred_fallthru
        _
    $region40: #{graph_encoder_forward.10} parent=5 // pred_fallthru
      _
  $region6: #{graph_encoder_forward.10} parent=0 // loop_footer
    %s13 = sadd.s32 1, %s9
  $region7: #{graph_encoder_forward.10} parent=0 // loop_footer_branch
    %8 = sbr.rel target = $region3
  $region8: #{graph_encoder_forward.10} parent=0 // loop_exit
    _

// kernel: graph_encoder_forward.9
$region0: #{graph_encoder_forward.9}
  #allocation0 [shape = 'u32[]', space=smem, size = 0x4, offset = 0x4, fixed_abs, tag = 'smem constant byte address 0x4 - core index']
  #allocation1 [shape = 'u32[72,128]{1,0:T(1,128)}', space=vmem, size = 0x9000, scoped, tag = 'internal scratch']
  %s0 = inlined_call_operand.vmem [shape: bf16[256,256], index: 0, kind: input, shape index: {}]
  %s1 = inlined_call_operand.vmem [shape: bf16[256,128], index: 1, kind: input, shape index: {}]
  %s2 = inlined_call_operand.vmem [shape: f32[1,128], index: 2, kind: input, shape index: {}]
  %s3 = inlined_call_operand.vmem [shape: f32[256,128], index: 3, kind: output, shape index: {}]
  %s4 = sld [smem:[#allocation0]]
  $region45: #{graph_encoder_forward.9} parent=0
    _
  %s6 = ssub.s32 1, %s4
  %s7 = scalar_select 0, %s6, %s4
  loop: start=0, step=1, limit=4
  $region2: #{graph_encoder_forward.9} parent=0 // loop_pre_header
    _
  $region3: #{graph_encoder_forward.9} parent=0 // loop_header
    %s9 = sphi 0, %s13
    %p10 = scmp.ge.s32.totalorder %s9, 4
    %s16 = sphi 0, %s35
    %s17 = sphi 0, %s31
    %s18 = sphi 0, %s27
    %s19 = sphi 0, %s16
    %s20 = sphi 0, %s17
    %s21 = sphi 0, %s18
    %s22 = sphi 0, %s19
    %s23 = sphi 0, %s20
    %s24 = sphi 0, %s21
    %s40 = sphi 0, %s42
    %s43 = sphi 0, %s40
    %s44 = sphi 0, %s43
    %s60 = sphi 0, %s44
    %s68 = sphi 0, %s70
    %s71 = sphi 0, %s68
    %s72 = sphi 0, %s71
    %s88 = sphi 0, %s72
    %s94 = sphi 0, %s96
    %s97 = sphi 0, %s94
    %s98 = sphi 0, %s97
    %s114 = sphi 0, %s98
    %s122 = sphi 0, %s124
    %s125 = sphi 0, %s122
    %s126 = sphi 0, %s125
    %s142 = sphi 0, %s126
  $region4: #{graph_encoder_forward.9} parent=0 // loop_header_branch
    %12 = sbr.rel (%p10) target = $region8
  $region5: #{graph_encoder_forward.9} parent=0 // loop_body
    %s14 = ssub.s32 %s9, 1
    %s15 = ssub.s32 %s9, 2
    %s25 = sadd.s32 1, %s18
    %p26 = scmp.ge.s32.totalorder %s25, 1
    %s27 = scalar_select %p26, 0, %s25
    %s28 = sadd.s32 1, %s17
    %s29 = scalar_select %p26, %s28, %s17
    %p30 = scmp.ge.s32.totalorder %s29, 1
    %s31 = scalar_select %p30, 0, %s29
    %s32 = sadd.s32 1, %s16
    %s33 = scalar_select %p30, %s32, %s16
    %p34 = scmp.ge.s32.totalorder %s33, 2
    %s35 = scalar_select %p34, 0, %s33
    %s36 = ssub.s32 %s16, %s35
    %s37 = ssub.s32 %s18, %s27
    %s38 = sor.u32 %s36, %s37
    %p39 = scmp.eq.s32.totalorder %s38, 0
    %s41 = sadd.s32 %s40, 1
    %s42 = scalar_select %p39, %s40, %s41
    %p45 = pneg %p39
    %p46 = scmp.eq.s32.totalorder %s9, 1
    %p47 = por %p45, %p46
    %p48 = scmp.ne.s32.totalorder %s40, %s43
    %p49 = scmp.eq.s32.totalorder %s9, 0
    %p50 = por %p48, %p49
    %p51 = scmp.ne.s32.totalorder %s40, %s43
    %p52 = scmp.eq.s32.totalorder %s14, 1
    %p53 = por %p51, %p52
    %p54 = scmp.ne.s32.totalorder %s43, %s44
    %p55 = scmp.eq.s32.totalorder %s14, 0
    %p56 = por %p54, %p55
    %p57 = scmp.ne.s32.totalorder %s43, %s44
    %p58 = scmp.eq.s32.totalorder %s15, 1
    %p59 = por %p57, %p58
    %p61 = scmp.ne.s32.totalorder %s44, %s60
    %p62 = scmp.eq.s32.totalorder %s15, 0
    %p63 = por %p61, %p62
    %s64 = ssub.s32 %s18, %s27
    %s65 = ssub.s32 %s17, %s31
    %s66 = sor.u32 %s64, %s65
    %p67 = scmp.eq.s32.totalorder %s66, 0
    %s69 = sadd.s32 %s68, 1
    %s70 = scalar_select %p67, %s68, %s69
    %p73 = pneg %p67
    %p74 = scmp.eq.s32.totalorder %s9, 1
    %p75 = por %p73, %p74
    %p76 = scmp.ne.s32.totalorder %s68, %s71
    %p77 = scmp.eq.s32.totalorder %s9, 0
    %p78 = por %p76, %p77
    %p79 = scmp.ne.s32.totalorder %s68, %s71
    %p80 = scmp.eq.s32.totalorder %s14, 1
    %p81 = por %p79, %p80
    %p82 = scmp.ne.s32.totalorder %s71, %s72
    %p83 = scmp.eq.s32.totalorder %s14, 0
    %p84 = por %p82, %p83
    %p85 = scmp.ne.s32.totalorder %s71, %s72
    %p86 = scmp.eq.s32.totalorder %s15, 1
    %p87 = por %p85, %p86
    %p89 = scmp.ne.s32.totalorder %s72, %s88
    %p90 = scmp.eq.s32.totalorder %s15, 0
    %p91 = por %p89, %p90
    %s92 = ssub.s32 %s17, %s31
    %p93 = scmp.eq.s32.totalorder %s92, 0
    %s95 = sadd.s32 %s94, 1
    %s96 = scalar_select %p93, %s94, %s95
    %p99 = pneg %p93
    %p100 = scmp.eq.s32.totalorder %s9, 1
    %p101 = por %p99, %p100
    %p102 = scmp.ne.s32.totalorder %s94, %s97
    %p103 = scmp.eq.s32.totalorder %s9, 0
    %p104 = por %p102, %p103
    %p105 = scmp.ne.s32.totalorder %s94, %s97
    %p106 = scmp.eq.s32.totalorder %s14, 1
    %p107 = por %p105, %p106
    %p108 = scmp.ne.s32.totalorder %s97, %s98
    %p109 = scmp.eq.s32.totalorder %s14, 0
    %p110 = por %p108, %p109
    %p111 = scmp.ne.s32.totalorder %s97, %s98
    %p112 = scmp.eq.s32.totalorder %s15, 1
    %p113 = por %p111, %p112
    %p115 = scmp.ne.s32.totalorder %s98, %s114
    %p116 = scmp.eq.s32.totalorder %s15, 0
    %p117 = por %p115, %p116
    %s118 = ssub.s32 %s16, %s35
    %s119 = ssub.s32 %s17, %s31
    %s120 = sor.u32 %s118, %s119
    %p121 = scmp.eq.s32.totalorder %s120, 0
    %s123 = sadd.s32 %s122, 1
    %s124 = scalar_select %p121, %s122, %s123
    %p127 = pneg %p121
    %p128 = scmp.eq.s32.totalorder %s9, 1
    %p129 = por %p127, %p128
    %p130 = scmp.ne.s32.totalorder %s122, %s125
    %p131 = scmp.eq.s32.totalorder %s9, 0
    %p132 = por %p130, %p131
    %p133 = scmp.ne.s32.totalorder %s122, %s125
    %p134 = scmp.eq.s32.totalorder %s14, 1
    %p135 = por %p133, %p134
    %p136 = scmp.ne.s32.totalorder %s125, %s126
    %p137 = scmp.eq.s32.totalorder %s14, 0
    %p138 = por %p136, %p137
    %p139 = scmp.ne.s32.totalorder %s125, %s126
    %p140 = scmp.eq.s32.totalorder %s15, 1
    %p141 = por %p139, %p140
    %p143 = scmp.ne.s32.totalorder %s126, %s142
    %p144 = scmp.eq.s32.totalorder %s15, 0
    %p145 = por %p143, %p144
    %p146 = scmp.le.s32.totalorder 1, %s9
    %p147 = scmp.lt.s32.totalorder %s9, 3
    %p148 = pnand %p146, %p147
    %p149 = pneg %p148
    // Predicated region
    $region9: #{graph_encoder_forward.9} parent=5 // pred_check
      _
    $region10: #{graph_encoder_forward.9} parent=5 // pred_check_branch
      %151 = sbr.rel (%p148) target = $region12
    $region11: #{graph_encoder_forward.9} parent=5 // pred_region
      %s152 = ssub.s32 %s9, 1
      // Predicated region
      $region13: #{graph_encoder_forward.9} parent=11 // pred_check
        %p153 = pneg %p84
      $region14: #{graph_encoder_forward.9} parent=11 // pred_check_branch
        %155 = sbr.rel (%p153) target = $region16
      $region15: #{graph_encoder_forward.9} parent=11 // pred_region
        %s156 = smul.u32 32, %s21
        %p157 = scmp.lt.s32.totalorder %s156, 31
        %s158 = scalar_select %p157, %s156, 31
        %p159 = scmp.lt.s32.totalorder %s20, 0
        %s160 = scalar_select %p159, %s20, 0
        %s161 = sadd.s32 %s160, %s158
        %s162 = smul.addr %s161, 4
        %s163 = scalar_lea.vmem %s1, %s162
        %s164 = smul.u32 32, %s21
      $region16: #{graph_encoder_forward.9} parent=11 // pred_fallthru
        _
      // Predicated region
      $region17: #{graph_encoder_forward.9} parent=11 // pred_check
        %p165 = pneg %p110
      $region18: #{graph_encoder_forward.9} parent=11 // pred_check_branch
        %167 = sbr.rel (%p165) target = $region20
      $region19: #{graph_encoder_forward.9} parent=11 // pred_region
        %p168 = scmp.lt.s32.totalorder %s20, 0
        %s169 = scalar_select %p168, %s20, 0
        %s170 = scalar_lea.vmem %s2, %s169
      $region20: #{graph_encoder_forward.9} parent=11 // pred_fallthru
        _
    $region12: #{graph_encoder_forward.9} parent=5 // pred_fallthru
      _
    %p171 = scmp.lt.s32.totalorder %s9, 2
    // Predicated region
    $region21: #{graph_encoder_forward.9} parent=5 // pred_check
      %p172 = pneg %p171
    $region22: #{graph_encoder_forward.9} parent=5 // pred_check_branch
      %174 = sbr.rel (%p172) target = $region24
    $region23: #{graph_encoder_forward.9} parent=5 // pred_region
      // Predicated region
      $region25: #{graph_encoder_forward.9} parent=23 // pred_check
        %p175 = pneg %p50
      $region26: #{graph_encoder_forward.9} parent=23 // pred_check_branch
        %177 = sbr.rel (%p175) target = $region28
      $region27: #{graph_encoder_forward.9} parent=23 // pred_region
        %s178 = smul.u32 16, %s16
        %s179 = smul.u32 2, %s18
        %p180 = scmp.lt.s32.totalorder %s178, 31
        %s181 = scalar_select %p180, %s178, 31
        %p182 = scmp.lt.s32.totalorder %s179, 1
        %s183 = scalar_select %p182, %s179, 1
        %s184 = smul.addr %s181, 2
        %s185 = sadd.s32 %s183, %s184
        %s186 = smul.addr %s185, 4
        %s187 = scalar_lea.vmem %s0, %s186
        %s188 = smul.u32 16, %s16
        %s189 = smul.u32 2, %s18
      $region28: #{graph_encoder_forward.9} parent=23 // pred_fallthru
        _
    $region24: #{graph_encoder_forward.9} parent=5 // pred_fallthru
      _
    %p190 = scmp.le.s32.totalorder 1, %s9
    %p191 = scmp.lt.s32.totalorder %s9, 3
    %p192 = pnand %p190, %p191
    %p193 = pneg %p192
    // Predicated region
    $region29: #{graph_encoder_forward.9} parent=5 // pred_check
      _
    $region30: #{graph_encoder_forward.9} parent=5 // pred_check_branch
      %195 = sbr.rel (%p192) target = $region32
    $region31: #{graph_encoder_forward.9} parent=5 // pred_region
      %s196 = ssub.s32 %s9, 1
      %s197 = smul.u32 16, %s19
      %s198 = smul.u32 2, %s21
      %p199 = scmp.lt.s32.totalorder %s197, 31
      %s200 = scalar_select %p199, %s197, 31
      %p201 = scmp.lt.s32.totalorder %s198, 1
      %s202 = scalar_select %p201, %s198, 1
      %s203 = smul.addr %s200, 2
      %s204 = sadd.s32 %s202, %s203
      %s205 = smul.addr %s204, 4
      %s206 = scalar_lea.vmem %s0, %s205
      %p207 = pneg %p56
      %p208 = pneg %p53
      %s209 = smul.u32 32, %s21
      %p210 = scmp.lt.s32.totalorder %s209, 31
      %s211 = scalar_select %p210, %s209, 31
      %p212 = scmp.lt.s32.totalorder %s20, 0
      %s213 = scalar_select %p212, %s20, 0
      %s214 = sadd.s32 %s213, %s211
      %s215 = smul.addr %s214, 4
      %s216 = scalar_lea.vmem %s1, %s215
      %p217 = pneg %p84
      %p218 = pneg %p81
      %p219 = scmp.lt.s32.totalorder %s20, 0
      %s220 = scalar_select %p219, %s20, 0
      %s221 = scalar_lea.vmem %s2, %s220
      %p222 = pneg %p110
      %p223 = pneg %p107
      %p224 = pneg %p138
      %p225 = pneg %p135
      %s226 = smul.u32 16, %s19
      %p227 = scmp.lt.s32.totalorder %s226, 31
      %s228 = scalar_select %p227, %s226, 31
      %p229 = scmp.lt.s32.totalorder %s20, 0
      %s230 = scalar_select %p229, %s20, 0
      %s231 = sadd.s32 %s230, %s228
      %s232 = smul.addr %s231, 8
      %s233 = scalar_lea.vmem %s3, %s232
      %s234 = smul.u32 16, %s19
      %s235 = smul.u32 2, %s21
      %p236 = scmp.lt.s32.totalorder %s234, 31
      %s237 = scalar_select %p236, %s234, 31
      %p238 = scmp.lt.s32.totalorder %s235, 1
      %s239 = scalar_select %p238, %s235, 1
      %s240 = smul.addr %s237, 2
      %s241 = sadd.s32 %s239, %s240
      %s242 = smul.addr %s241, 4
      %s243 = scalar_lea.vmem %s0, %s242
      %s244 = smul.u32 16, %s19
      %s245 = smul.u32 2, %s21
      %s246 = smul.u32 32, %s21
      %p247 = scmp.lt.s32.totalorder %s246, 31
      %s248 = scalar_select %p247, %s246, 31
      %p249 = scmp.lt.s32.totalorder %s20, 0
      %s250 = scalar_select %p249, %s20, 0
      %s251 = sadd.s32 %s250, %s248
      %s252 = smul.addr %s251, 4
      %s253 = scalar_lea.vmem %s1, %s252
      %s254 = smul.u32 32, %s21
      %p255 = scmp.lt.s32.totalorder %s20, 0
      %s256 = scalar_select %p255, %s20, 0
      %s257 = scalar_lea.vmem %s2, %s256
      %s258 = smul.u32 16, %s19
      %p259 = scmp.lt.s32.totalorder %s258, 31
      %s260 = scalar_select %p259, %s258, 31
      %p261 = scmp.lt.s32.totalorder %s20, 0
      %s262 = scalar_select %p261, %s20, 0
      %s263 = sadd.s32 %s262, %s260
      %s264 = smul.addr %s263, 8
      %s265 = scalar_lea.vmem %s3, %s264
      %s266 = smul.u32 16, %s19
      %v267 = vld [vmem:[%s243] sm:$0xff]
      %v268 = vld [vmem:[%s243 + $0x8] sm:$0xff]
      %v269 = vld [vmem:[%s243 + $0x10] sm:$0xff]
      %v270 = vld [vmem:[%s243 + $0x18] sm:$0xff]
      %v271 = vld [vmem:[%s243 + $0x20] sm:$0xff]
      %v272 = vld [vmem:[%s243 + $0x28] sm:$0xff]
      %v273 = vld [vmem:[%s243 + $0x30] sm:$0xff]
      %v274 = vld [vmem:[%s243 + $0x38] sm:$0xff]
      %v275 = vld [vmem:[%s243 + $0x40] sm:$0xff]
      %v276 = vld [vmem:[%s243 + $0x48] sm:$0xff]
      %v277 = vld [vmem:[%s243 + $0x50] sm:$0xff]
      %v278 = vld [vmem:[%s243 + $0x58] sm:$0xff]
      %v279 = vld [vmem:[%s243 + $0x60] sm:$0xff]
      %v280 = vld [vmem:[%s243 + $0x68] sm:$0xff]
      %v281 = vld [vmem:[%s243 + $0x70] sm:$0xff]
      %v282 = vld [vmem:[%s243 + $0x78] sm:$0xff]
      %v283 = vld [vmem:[%s253] sm:$0xf]
      %v284 = vld [vmem:[%s253 + $0x4] sm:$0xf]
      %v285 = vld [vmem:[%s253 + $0x8] sm:$0xf]
      %v286 = vld [vmem:[%s253 + $0xc] sm:$0xf]
      %v287 = vld [vmem:[%s253 + $0x10] sm:$0xf]
      %v288 = vld [vmem:[%s253 + $0x14] sm:$0xf]
      %v289 = vld [vmem:[%s253 + $0x18] sm:$0xf]
      %v290 = vld [vmem:[%s253 + $0x1c] sm:$0xf]
      %v291 = vld [vmem:[%s253 + $0x20] sm:$0xf]
      %v292 = vld [vmem:[%s253 + $0x24] sm:$0xf]
      %v293 = vld [vmem:[%s253 + $0x28] sm:$0xf]
      %v294 = vld [vmem:[%s253 + $0x2c] sm:$0xf]
      %v295 = vld [vmem:[%s253 + $0x30] sm:$0xf]
      %v296 = vld [vmem:[%s253 + $0x34] sm:$0xf]
      %v297 = vld [vmem:[%s253 + $0x38] sm:$0xf]
      %v298 = vld [vmem:[%s253 + $0x3c] sm:$0xf]
      %v299 = vld [vmem:[%s253 + $0x40] sm:$0xf]
      %v300 = vld [vmem:[%s253 + $0x44] sm:$0xf]
      %v301 = vld [vmem:[%s253 + $0x48] sm:$0xf]
      %v302 = vld [vmem:[%s253 + $0x4c] sm:$0xf]
      %v303 = vld [vmem:[%s253 + $0x50] sm:$0xf]
      %v304 = vld [vmem:[%s253 + $0x54] sm:$0xf]
      %v305 = vld [vmem:[%s253 + $0x58] sm:$0xf]
      %v306 = vld [vmem:[%s253 + $0x5c] sm:$0xf]
      %v307 = vld [vmem:[%s253 + $0x60] sm:$0xf]
      %v308 = vld [vmem:[%s253 + $0x64] sm:$0xf]
      %v309 = vld [vmem:[%s253 + $0x68] sm:$0xf]
      %v310 = vld [vmem:[%s253 + $0x6c] sm:$0xf]
      %v311 = vld [vmem:[%s253 + $0x70] sm:$0xf]
      %v312 = vld [vmem:[%s253 + $0x74] sm:$0xf]
      %v313 = vld [vmem:[%s253 + $0x78] sm:$0xf]
      %v314 = vld [vmem:[%s253 + $0x7c] sm:$0xf]
      %v315 = vld [vmem:[%s257] sm:$0x1]
      %v317 = vperm.slane %v315, 0
      %v335 = vunpack.c.l.b16 %v267
      %v336 = vunpack.c.h.b16 %v267
      %v337 = vunpack.c.l.b16 %v268
      %v338 = vunpack.c.h.b16 %v268
      %v339 = vunpack.c.l.b16 %v269
      %v340 = vunpack.c.h.b16 %v269
      %v341 = vunpack.c.l.b16 %v270
      %v342 = vunpack.c.h.b16 %v270
      %v343 = vunpack.c.l.b16 %v271
      %v344 = vunpack.c.h.b16 %v271
      %v345 = vunpack.c.l.b16 %v272
      %v346 = vunpack.c.h.b16 %v272
      %v347 = vunpack.c.l.b16 %v273
      %v348 = vunpack.c.h.b16 %v273
      %v349 = vunpack.c.l.b16 %v274
      %v350 = vunpack.c.h.b16 %v274
      %v351 = vunpack.c.l.b16 %v275
      %v352 = vunpack.c.h.b16 %v275
      %v353 = vunpack.c.l.b16 %v276
      %v354 = vunpack.c.h.b16 %v276
      %v355 = vunpack.c.l.b16 %v277
      %v356 = vunpack.c.h.b16 %v277
      %v357 = vunpack.c.l.b16 %v278
      %v358 = vunpack.c.h.b16 %v278
      %v359 = vunpack.c.l.b16 %v279
      %v360 = vunpack.c.h.b16 %v279
      %v361 = vunpack.c.l.b16 %v280
      %v362 = vunpack.c.h.b16 %v280
      %v363 = vunpack.c.l.b16 %v281
      %v364 = vunpack.c.h.b16 %v281
      %v365 = vunpack.c.l.b16 %v282
      %v366 = vunpack.c.h.b16 %v282
      %v367 = vpack.c.b16 %v337, %v335
      %v368 = vpack.c.b16 %v338, %v336
      %v369 = vpack.c.b16 %v341, %v339
      %v370 = vpack.c.b16 %v342, %v340
      %v371 = vpack.c.b16 %v345, %v343
      %v372 = vpack.c.b16 %v346, %v344
      %v373 = vpack.c.b16 %v349, %v347
      %v374 = vpack.c.b16 %v350, %v348
      %v375 = vpack.c.b16 %v353, %v351
      %v376 = vpack.c.b16 %v354, %v352
      %v377 = vpack.c.b16 %v357, %v355
      %v378 = vpack.c.b16 %v358, %v356
      %v379 = vpack.c.b16 %v361, %v359
      %v380 = vpack.c.b16 %v362, %v360
      %v381 = vpack.c.b16 %v365, %v363
      %v382 = vpack.c.b16 %v366, %v364
      %v431 = vunpack.c.l.b16 %v283
      %v432 = vunpack.c.l.b16 %v284
      %v433 = vunpack.c.l.b16 %v285
      %v434 = vunpack.c.l.b16 %v286
      %v435 = vunpack.c.l.b16 %v287
      %v436 = vunpack.c.l.b16 %v288
      %v437 = vunpack.c.l.b16 %v289
      %v438 = vunpack.c.l.b16 %v290
      %v439 = vunpack.c.l.b16 %v291
      %v440 = vunpack.c.l.b16 %v292
      %v441 = vunpack.c.l.b16 %v293
      %v442 = vunpack.c.l.b16 %v294
      %v443 = vunpack.c.l.b16 %v295
      %v444 = vunpack.c.l.b16 %v296
      %v445 = vunpack.c.l.b16 %v297
      %v446 = vunpack.c.l.b16 %v298
      %v447 = vunpack.c.l.b16 %v299
      %v448 = vunpack.c.l.b16 %v300
      %v449 = vunpack.c.l.b16 %v301
      %v450 = vunpack.c.l.b16 %v302
      %v451 = vunpack.c.l.b16 %v303
      %v452 = vunpack.c.l.b16 %v304
      %v453 = vunpack.c.l.b16 %v305
      %v454 = vunpack.c.l.b16 %v306
      %v455 = vunpack.c.l.b16 %v307
      %v456 = vunpack.c.l.b16 %v308
      %v457 = vunpack.c.l.b16 %v309
      %v458 = vunpack.c.l.b16 %v310
      %v459 = vunpack.c.l.b16 %v311
      %v460 = vunpack.c.l.b16 %v312
      %v461 = vunpack.c.l.b16 %v313
      %v462 = vunpack.c.l.b16 %v314
      %v463 = vpack.c.b16 %v432, %v431
      %v464 = vpack.c.b16 %v434, %v433
      %v465 = vpack.c.b16 %v436, %v435
      %v466 = vpack.c.b16 %v438, %v437
      %v467 = vpack.c.b16 %v440, %v439
      %v468 = vpack.c.b16 %v442, %v441
      %v469 = vpack.c.b16 %v444, %v443
      %v470 = vpack.c.b16 %v446, %v445
      %v471 = vpack.c.b16 %v448, %v447
      %v472 = vpack.c.b16 %v450, %v449
      %v473 = vpack.c.b16 %v452, %v451
      %v474 = vpack.c.b16 %v454, %v453
      %v475 = vpack.c.b16 %v456, %v455
      %v476 = vpack.c.b16 %v458, %v457
      %v477 = vpack.c.b16 %v460, %v459
      %v478 = vpack.c.b16 %v462, %v461
      %495 = vmatpush.bf16.msra.mxu0 %v470
      %496 = vmatpush.bf16.msra.mxu0 %v469
      %497 = vmatpush.bf16.msra.mxu0 %v468
      %498 = vmatpush.bf16.msra.mxu0 %v467
      %499 = vmatpush.bf16.msra.mxu0 %v466
      %500 = vmatpush.bf16.msra.mxu0 %v465
      %501 = vmatpush.bf16.msra.mxu0 %v464
      %502 = vmatpush.bf16.msra.mxu0 %v463
      %503 = vmatmul.bf16.gmra.mxu0 %v367
      %v504 = vpop.f32.mrf.mxu0
      %v505 = vadd.f32 %v317, %v504
      %v506 = vpop.f32.mrf.mxu0
      %v507 = vadd.f32 %v317, %v506
      %508 = vmatmul.bf16.gmra.mxu0 %v369
      %v509 = vpop.f32.mrf.mxu0
      %v510 = vadd.f32 %v317, %v509
      %v511 = vpop.f32.mrf.mxu0
      %v512 = vadd.f32 %v317, %v511
      %513 = vmatmul.bf16.gmra.mxu0 %v371
      %v514 = vpop.f32.mrf.mxu0
      %v515 = vadd.f32 %v317, %v514
      %v516 = vpop.f32.mrf.mxu0
      %v517 = vadd.f32 %v317, %v516
      %518 = vmatmul.bf16.gmra.mxu0 %v373
      %v519 = vpop.f32.mrf.mxu0
      %v520 = vadd.f32 %v317, %v519
      %v521 = vpop.f32.mrf.mxu0
      %v522 = vadd.f32 %v317, %v521
      %523 = vmatmul.bf16.gmra.mxu0 %v375
      %v524 = vpop.f32.mrf.mxu0
      %v525 = vadd.f32 %v317, %v524
      %v526 = vpop.f32.mrf.mxu0
      %v527 = vadd.f32 %v317, %v526
      %528 = vmatmul.bf16.gmra.mxu0 %v377
      %v529 = vpop.f32.mrf.mxu0
      %v530 = vadd.f32 %v317, %v529
      %v531 = vpop.f32.mrf.mxu0
      %v532 = vadd.f32 %v317, %v531
      %533 = vmatmul.bf16.gmra.mxu0 %v379
      %v534 = vpop.f32.mrf.mxu0
      %v535 = vadd.f32 %v317, %v534
      %v536 = vpop.f32.mrf.mxu0
      %v537 = vadd.f32 %v317, %v536
      %538 = vmatmul.bf16.gmra.mxu0 %v381
      %v539 = vpop.f32.mrf.mxu0
      %v540 = vadd.f32 %v317, %v539
      %v541 = vpop.f32.mrf.mxu0
      %v542 = vadd.f32 %v317, %v541
      %543 = vdwg.mxu0
      %544 = vmatpush.bf16.msra.mxu0 %v478
      %545 = vmatpush.bf16.msra.mxu0 %v477
      %546 = vmatpush.bf16.msra.mxu0 %v476
      %547 = vmatpush.bf16.msra.mxu0 %v475
      %548 = vmatpush.bf16.msra.mxu0 %v474
      %549 = vmatpush.bf16.msra.mxu0 %v473
      %550 = vmatpush.bf16.msra.mxu0 %v472
      %551 = vmatpush.bf16.msra.mxu0 %v471
      %552 = vmatmul.bf16.gmra.mxu0 %v368
      %v553 = vpop.f32.mrf.mxu0
      %v554 = vadd.f32 %v505, %v553
      %v555 = vpop.f32.mrf.mxu0
      %v556 = vadd.f32 %v507, %v555
      %557 = vmatmul.bf16.gmra.mxu0 %v370
      %v558 = vpop.f32.mrf.mxu0
      %v559 = vadd.f32 %v510, %v558
      %v560 = vpop.f32.mrf.mxu0
      %v561 = vadd.f32 %v512, %v560
      %562 = vmatmul.bf16.gmra.mxu0 %v372
      %v563 = vpop.f32.mrf.mxu0
      %v564 = vadd.f32 %v515, %v563
      %v565 = vpop.f32.mrf.mxu0
      %v566 = vadd.f32 %v517, %v565
      %567 = vmatmul.bf16.gmra.mxu0 %v374
      %v568 = vpop.f32.mrf.mxu0
      %v569 = vadd.f32 %v520, %v568
      %v570 = vpop.f32.mrf.mxu0
      %v571 = vadd.f32 %v522, %v570
      %572 = vmatmul.bf16.gmra.mxu0 %v376
      %v573 = vpop.f32.mrf.mxu0
      %v574 = vadd.f32 %v525, %v573
      %v575 = vpop.f32.mrf.mxu0
      %v576 = vadd.f32 %v527, %v575
      %577 = vmatmul.bf16.gmra.mxu0 %v378
      %v578 = vpop.f32.mrf.mxu0
      %v579 = vadd.f32 %v530, %v578
      %v580 = vpop.f32.mrf.mxu0
      %v581 = vadd.f32 %v532, %v580
      %582 = vmatmul.bf16.gmra.mxu0 %v380
      %v583 = vpop.f32.mrf.mxu0
      %v584 = vadd.f32 %v535, %v583
      %v585 = vpop.f32.mrf.mxu0
      %v586 = vadd.f32 %v537, %v585
      %587 = vmatmul.bf16.gmra.mxu0 %v382
      %v588 = vpop.f32.mrf.mxu0
      %v589 = vadd.f32 %v540, %v588
      %v590 = vpop.f32.mrf.mxu0
      %v591 = vadd.f32 %v542, %v590
      %592 = vdwg.mxu0
      %593 = vst [vmem:[%s265] sm:$0xff] %v554
      %594 = vst [vmem:[%s265 + $0x8] sm:$0xff] %v556
      %595 = vst [vmem:[%s265 + $0x10] sm:$0xff] %v559
      %596 = vst [vmem:[%s265 + $0x18] sm:$0xff] %v561
      %597 = vst [vmem:[%s265 + $0x20] sm:$0xff] %v564
      %598 = vst [vmem:[%s265 + $0x28] sm:$0xff] %v566
      %599 = vst [vmem:[%s265 + $0x30] sm:$0xff] %v569
      %600 = vst [vmem:[%s265 + $0x38] sm:$0xff] %v571
      %601 = vst [vmem:[%s265 + $0x40] sm:$0xff] %v574
      %602 = vst [vmem:[%s265 + $0x48] sm:$0xff] %v576
      %603 = vst [vmem:[%s265 + $0x50] sm:$0xff] %v579
      %604 = vst [vmem:[%s265 + $0x58] sm:$0xff] %v581
      %605 = vst [vmem:[%s265 + $0x60] sm:$0xff] %v584
      %606 = vst [vmem:[%s265 + $0x68] sm:$0xff] %v586
      %607 = vst [vmem:[%s265 + $0x70] sm:$0xff] %v589
      %608 = vst [vmem:[%s265 + $0x78] sm:$0xff] %v591
      %s609 = smul.u32 16, %s19
      %p610 = scmp.lt.s32.totalorder %s609, 31
      %s611 = scalar_select %p610, %s609, 31
      %p612 = scmp.lt.s32.totalorder %s20, 0
      %s613 = scalar_select %p612, %s20, 0
      %s614 = sadd.s32 %s613, %s611
      %s615 = smul.addr %s614, 8
      %s616 = scalar_lea.vmem %s3, %s615
      // Predicated region
      $region33: #{graph_encoder_forward.9} parent=31 // pred_check
        %p617 = pneg %p135
      $region34: #{graph_encoder_forward.9} parent=31 // pred_check_branch
        %619 = sbr.rel (%p617) target = $region36
      $region35: #{graph_encoder_forward.9} parent=31 // pred_region
        %s620 = smul.u32 16, %s19
      $region36: #{graph_encoder_forward.9} parent=31 // pred_fallthru
        _
    $region32: #{graph_encoder_forward.9} parent=5 // pred_fallthru
      _
    %p621 = scmp.le.s32.totalorder 2, %s9
    // Predicated region
    $region37: #{graph_encoder_forward.9} parent=5 // pred_check
      %p622 = pneg %p621
    $region38: #{graph_encoder_forward.9} parent=5 // pred_check_branch
      %624 = sbr.rel (%p622) target = $region40
    $region39: #{graph_encoder_forward.9} parent=5 // pred_region
      %s625 = ssub.s32 %s9, 2
      // Predicated region
      $region41: #{graph_encoder_forward.9} parent=39 // pred_check
        %p626 = pneg %p141
      $region42: #{graph_encoder_forward.9} parent=39 // pred_check_branch
        %628 = sbr.rel (%p626) target = $region44
      $region43: #{graph_encoder_forward.9} parent=39 // pred_region
        %s629 = smul.u32 16, %s22
        %p630 = scmp.lt.s32.totalorder %s629, 31
        %s631 = scalar_select %p630, %s629, 31
        %p632 = scmp.lt.s32.totalorder %s23, 0
        %s633 = scalar_select %p632, %s23, 0
        %s634 = sadd.s32 %s633, %s631
        %s635 = smul.addr %s634, 8
        %s636 = scalar_lea.vmem %s3, %s635
      $region44: #{graph_encoder_forward.9} parent=39 // pred_fallthru
        _
    $region40: #{graph_encoder_forward.9} parent=5 // pred_fallthru
      _
  $region6: #{graph_encoder_forward.9} parent=0 // loop_footer
    %s13 = sadd.s32 1, %s9
  $region7: #{graph_encoder_forward.9} parent=0 // loop_footer_branch
    %8 = sbr.rel target = $region3
  $region8: #{graph_encoder_forward.9} parent=0 // loop_exit
    _

// kernel: graph_encoder_forward.7
$region0: #{graph_encoder_forward.7}
  #allocation0 [shape = 'u32[]', space=smem, size = 0x4, offset = 0x4, fixed_abs, tag = 'smem constant byte address 0x4 - core index']
  #allocation1 [shape = 'u32[72,128]{1,0:T(1,128)}', space=vmem, size = 0x9000, scoped, tag = 'internal scratch']
  %s0 = inlined_call_operand.vmem [shape: bf16[256,256], index: 0, kind: input, shape index: {}]
  %s1 = inlined_call_operand.vmem [shape: bf16[256,128], index: 1, kind: input, shape index: {}]
  %s2 = inlined_call_operand.vmem [shape: f32[1,128], index: 2, kind: input, shape index: {}]
  %s3 = inlined_call_operand.vmem [shape: f32[256,128], index: 3, kind: output, shape index: {}]
  %s4 = sld [smem:[#allocation0]]
  $region45: #{graph_encoder_forward.7} parent=0
    _
  %s6 = ssub.s32 1, %s4
  %s7 = scalar_select 0, %s6, %s4
  loop: start=0, step=1, limit=4
  $region2: #{graph_encoder_forward.7} parent=0 // loop_pre_header
    _
  $region3: #{graph_encoder_forward.7} parent=0 // loop_header
    %s9 = sphi 0, %s13
    %p10 = scmp.ge.s32.totalorder %s9, 4
    %s16 = sphi 0, %s35
    %s17 = sphi 0, %s31
    %s18 = sphi 0, %s27
    %s19 = sphi 0, %s16
    %s20 = sphi 0, %s17
    %s21 = sphi 0, %s18
    %s22 = sphi 0, %s19
    %s23 = sphi 0, %s20
    %s24 = sphi 0, %s21
    %s40 = sphi 0, %s42
    %s43 = sphi 0, %s40
    %s44 = sphi 0, %s43
    %s60 = sphi 0, %s44
    %s68 = sphi 0, %s70
    %s71 = sphi 0, %s68
    %s72 = sphi 0, %s71
    %s88 = sphi 0, %s72
    %s94 = sphi 0, %s96
    %s97 = sphi 0, %s94
    %s98 = sphi 0, %s97
    %s114 = sphi 0, %s98
    %s122 = sphi 0, %s124
    %s125 = sphi 0, %s122
    %s126 = sphi 0, %s125
    %s142 = sphi 0, %s126
  $region4: #{graph_encoder_forward.7} parent=0 // loop_header_branch
    %12 = sbr.rel (%p10) target = $region8
  $region5: #{graph_encoder_forward.7} parent=0 // loop_body
    %s14 = ssub.s32 %s9, 1
    %s15 = ssub.s32 %s9, 2
    %s25 = sadd.s32 1, %s18
    %p26 = scmp.ge.s32.totalorder %s25, 1
    %s27 = scalar_select %p26, 0, %s25
    %s28 = sadd.s32 1, %s17
    %s29 = scalar_select %p26, %s28, %s17
    %p30 = scmp.ge.s32.totalorder %s29, 1
    %s31 = scalar_select %p30, 0, %s29
    %s32 = sadd.s32 1, %s16
    %s33 = scalar_select %p30, %s32, %s16
    %p34 = scmp.ge.s32.totalorder %s33, 2
    %s35 = scalar_select %p34, 0, %s33
    %s36 = ssub.s32 %s16, %s35
    %s37 = ssub.s32 %s18, %s27
    %s38 = sor.u32 %s36, %s37
    %p39 = scmp.eq.s32.totalorder %s38, 0
    %s41 = sadd.s32 %s40, 1
    %s42 = scalar_select %p39, %s40, %s41
    %p45 = pneg %p39
    %p46 = scmp.eq.s32.totalorder %s9, 1
    %p47 = por %p45, %p46
    %p48 = scmp.ne.s32.totalorder %s40, %s43
    %p49 = scmp.eq.s32.totalorder %s9, 0
    %p50 = por %p48, %p49
    %p51 = scmp.ne.s32.totalorder %s40, %s43
    %p52 = scmp.eq.s32.totalorder %s14, 1
    %p53 = por %p51, %p52
    %p54 = scmp.ne.s32.totalorder %s43, %s44
    %p55 = scmp.eq.s32.totalorder %s14, 0
    %p56 = por %p54, %p55
    %p57 = scmp.ne.s32.totalorder %s43, %s44
    %p58 = scmp.eq.s32.totalorder %s15, 1
    %p59 = por %p57, %p58
    %p61 = scmp.ne.s32.totalorder %s44, %s60
    %p62 = scmp.eq.s32.totalorder %s15, 0
    %p63 = por %p61, %p62
    %s64 = ssub.s32 %s18, %s27
    %s65 = ssub.s32 %s17, %s31
    %s66 = sor.u32 %s64, %s65
    %p67 = scmp.eq.s32.totalorder %s66, 0
    %s69 = sadd.s32 %s68, 1
    %s70 = scalar_select %p67, %s68, %s69
    %p73 = pneg %p67
    %p74 = scmp.eq.s32.totalorder %s9, 1
    %p75 = por %p73, %p74
    %p76 = scmp.ne.s32.totalorder %s68, %s71
    %p77 = scmp.eq.s32.totalorder %s9, 0
    %p78 = por %p76, %p77
    %p79 = scmp.ne.s32.totalorder %s68, %s71
    %p80 = scmp.eq.s32.totalorder %s14, 1
    %p81 = por %p79, %p80
    %p82 = scmp.ne.s32.totalorder %s71, %s72
    %p83 = scmp.eq.s32.totalorder %s14, 0
    %p84 = por %p82, %p83
    %p85 = scmp.ne.s32.totalorder %s71, %s72
    %p86 = scmp.eq.s32.totalorder %s15, 1
    %p87 = por %p85, %p86
    %p89 = scmp.ne.s32.totalorder %s72, %s88
    %p90 = scmp.eq.s32.totalorder %s15, 0
    %p91 = por %p89, %p90
    %s92 = ssub.s32 %s17, %s31
    %p93 = scmp.eq.s32.totalorder %s92, 0
    %s95 = sadd.s32 %s94, 1
    %s96 = scalar_select %p93, %s94, %s95
    %p99 = pneg %p93
    %p100 = scmp.eq.s32.totalorder %s9, 1
    %p101 = por %p99, %p100
    %p102 = scmp.ne.s32.totalorder %s94, %s97
    %p103 = scmp.eq.s32.totalorder %s9, 0
    %p104 = por %p102, %p103
    %p105 = scmp.ne.s32.totalorder %s94, %s97
    %p106 = scmp.eq.s32.totalorder %s14, 1
    %p107 = por %p105, %p106
    %p108 = scmp.ne.s32.totalorder %s97, %s98
    %p109 = scmp.eq.s32.totalorder %s14, 0
    %p110 = por %p108, %p109
    %p111 = scmp.ne.s32.totalorder %s97, %s98
    %p112 = scmp.eq.s32.totalorder %s15, 1
    %p113 = por %p111, %p112
    %p115 = scmp.ne.s32.totalorder %s98, %s114
    %p116 = scmp.eq.s32.totalorder %s15, 0
    %p117 = por %p115, %p116
    %s118 = ssub.s32 %s16, %s35
    %s119 = ssub.s32 %s17, %s31
    %s120 = sor.u32 %s118, %s119
    %p121 = scmp.eq.s32.totalorder %s120, 0
    %s123 = sadd.s32 %s122, 1
    %s124 = scalar_select %p121, %s122, %s123
    %p127 = pneg %p121
    %p128 = scmp.eq.s32.totalorder %s9, 1
    %p129 = por %p127, %p128
    %p130 = scmp.ne.s32.totalorder %s122, %s125
    %p131 = scmp.eq.s32.totalorder %s9, 0
    %p132 = por %p130, %p131
    %p133 = scmp.ne.s32.totalorder %s122, %s125
    %p134 = scmp.eq.s32.totalorder %s14, 1
    %p135 = por %p133, %p134
    %p136 = scmp.ne.s32.totalorder %s125, %s126
    %p137 = scmp.eq.s32.totalorder %s14, 0
    %p138 = por %p136, %p137
    %p139 = scmp.ne.s32.totalorder %s125, %s126
    %p140 = scmp.eq.s32.totalorder %s15, 1
    %p141 = por %p139, %p140
    %p143 = scmp.ne.s32.totalorder %s126, %s142
    %p144 = scmp.eq.s32.totalorder %s15, 0
    %p145 = por %p143, %p144
    %p146 = scmp.le.s32.totalorder 1, %s9
    %p147 = scmp.lt.s32.totalorder %s9, 3
    %p148 = pnand %p146, %p147
    %p149 = pneg %p148
    // Predicated region
    $region9: #{graph_encoder_forward.7} parent=5 // pred_check
      _
    $region10: #{graph_encoder_forward.7} parent=5 // pred_check_branch
      %151 = sbr.rel (%p148) target = $region12
    $region11: #{graph_encoder_forward.7} parent=5 // pred_region
      %s152 = ssub.s32 %s9, 1
      // Predicated region
      $region13: #{graph_encoder_forward.7} parent=11 // pred_check
        %p153 = pneg %p84
      $region14: #{graph_encoder_forward.7} parent=11 // pred_check_branch
        %155 = sbr.rel (%p153) target = $region16
      $region15: #{graph_encoder_forward.7} parent=11 // pred_region
        %s156 = smul.u32 32, %s21
        %p157 = scmp.lt.s32.totalorder %s156, 31
        %s158 = scalar_select %p157, %s156, 31
        %p159 = scmp.lt.s32.totalorder %s20, 0
        %s160 = scalar_select %p159, %s20, 0
        %s161 = sadd.s32 %s160, %s158
        %s162 = smul.addr %s161, 4
        %s163 = scalar_lea.vmem %s1, %s162
        %s164 = smul.u32 32, %s21
      $region16: #{graph_encoder_forward.7} parent=11 // pred_fallthru
        _
      // Predicated region
      $region17: #{graph_encoder_forward.7} parent=11 // pred_check
        %p165 = pneg %p110
      $region18: #{graph_encoder_forward.7} parent=11 // pred_check_branch
        %167 = sbr.rel (%p165) target = $region20
      $region19: #{graph_encoder_forward.7} parent=11 // pred_region
        %p168 = scmp.lt.s32.totalorder %s20, 0
        %s169 = scalar_select %p168, %s20, 0
        %s170 = scalar_lea.vmem %s2, %s169
      $region20: #{graph_encoder_forward.7} parent=11 // pred_fallthru
        _
    $region12: #{graph_encoder_forward.7} parent=5 // pred_fallthru
      _
    %p171 = scmp.lt.s32.totalorder %s9, 2
    // Predicated region
    $region21: #{graph_encoder_forward.7} parent=5 // pred_check
      %p172 = pneg %p171
    $region22: #{graph_encoder_forward.7} parent=5 // pred_check_branch
      %174 = sbr.rel (%p172) target = $region24
    $region23: #{graph_encoder_forward.7} parent=5 // pred_region
      // Predicated region
      $region25: #{graph_encoder_forward.7} parent=23 // pred_check
        %p175 = pneg %p50
      $region26: #{graph_encoder_forward.7} parent=23 // pred_check_branch
        %177 = sbr.rel (%p175) target = $region28
      $region27: #{graph_encoder_forward.7} parent=23 // pred_region
        %s178 = smul.u32 16, %s16
        %s179 = smul.u32 2, %s18
        %p180 = scmp.lt.s32.totalorder %s178, 31
        %s181 = scalar_select %p180, %s178, 31
        %p182 = scmp.lt.s32.totalorder %s179, 1
        %s183 = scalar_select %p182, %s179, 1
        %s184 = smul.addr %s181, 2
        %s185 = sadd.s32 %s183, %s184
        %s186 = smul.addr %s185, 4
        %s187 = scalar_lea.vmem %s0, %s186
        %s188 = smul.u32 16, %s16
        %s189 = smul.u32 2, %s18
      $region28: #{graph_encoder_forward.7} parent=23 // pred_fallthru
        _
    $region24: #{graph_encoder_forward.7} parent=5 // pred_fallthru
      _
    %p190 = scmp.le.s32.totalorder 1, %s9
    %p191 = scmp.lt.s32.totalorder %s9, 3
    %p192 = pnand %p190, %p191
    %p193 = pneg %p192
    // Predicated region
    $region29: #{graph_encoder_forward.7} parent=5 // pred_check
      _
    $region30: #{graph_encoder_forward.7} parent=5 // pred_check_branch
      %195 = sbr.rel (%p192) target = $region32
    $region31: #{graph_encoder_forward.7} parent=5 // pred_region
      %s196 = ssub.s32 %s9, 1
      %s197 = smul.u32 16, %s19
      %s198 = smul.u32 2, %s21
      %p199 = scmp.lt.s32.totalorder %s197, 31
      %s200 = scalar_select %p199, %s197, 31
      %p201 = scmp.lt.s32.totalorder %s198, 1
      %s202 = scalar_select %p201, %s198, 1
      %s203 = smul.addr %s200, 2
      %s204 = sadd.s32 %s202, %s203
      %s205 = smul.addr %s204, 4
      %s206 = scalar_lea.vmem %s0, %s205
      %p207 = pneg %p56
      %p208 = pneg %p53
      %s209 = smul.u32 32, %s21
      %p210 = scmp.lt.s32.totalorder %s209, 31
      %s211 = scalar_select %p210, %s209, 31
      %p212 = scmp.lt.s32.totalorder %s20, 0
      %s213 = scalar_select %p212, %s20, 0
      %s214 = sadd.s32 %s213, %s211
      %s215 = smul.addr %s214, 4
      %s216 = scalar_lea.vmem %s1, %s215
      %p217 = pneg %p84
      %p218 = pneg %p81
      %p219 = scmp.lt.s32.totalorder %s20, 0
      %s220 = scalar_select %p219, %s20, 0
      %s221 = scalar_lea.vmem %s2, %s220
      %p222 = pneg %p110
      %p223 = pneg %p107
      %p224 = pneg %p138
      %p225 = pneg %p135
      %s226 = smul.u32 16, %s19
      %p227 = scmp.lt.s32.totalorder %s226, 31
      %s228 = scalar_select %p227, %s226, 31
      %p229 = scmp.lt.s32.totalorder %s20, 0
      %s230 = scalar_select %p229, %s20, 0
      %s231 = sadd.s32 %s230, %s228
      %s232 = smul.addr %s231, 8
      %s233 = scalar_lea.vmem %s3, %s232
      %s234 = smul.u32 16, %s19
      %s235 = smul.u32 2, %s21
      %p236 = scmp.lt.s32.totalorder %s234, 31
      %s237 = scalar_select %p236, %s234, 31
      %p238 = scmp.lt.s32.totalorder %s235, 1
      %s239 = scalar_select %p238, %s235, 1
      %s240 = smul.addr %s237, 2
      %s241 = sadd.s32 %s239, %s240
      %s242 = smul.addr %s241, 4
      %s243 = scalar_lea.vmem %s0, %s242
      %s244 = smul.u32 16, %s19
      %s245 = smul.u32 2, %s21
      %s246 = smul.u32 32, %s21
      %p247 = scmp.lt.s32.totalorder %s246, 31
      %s248 = scalar_select %p247, %s246, 31
      %p249 = scmp.lt.s32.totalorder %s20, 0
      %s250 = scalar_select %p249, %s20, 0
      %s251 = sadd.s32 %s250, %s248
      %s252 = smul.addr %s251, 4
      %s253 = scalar_lea.vmem %s1, %s252
      %s254 = smul.u32 32, %s21
      %p255 = scmp.lt.s32.totalorder %s20, 0
      %s256 = scalar_select %p255, %s20, 0
      %s257 = scalar_lea.vmem %s2, %s256
      %s258 = smul.u32 16, %s19
      %p259 = scmp.lt.s32.totalorder %s258, 31
      %s260 = scalar_select %p259, %s258, 31
      %p261 = scmp.lt.s32.totalorder %s20, 0
      %s262 = scalar_select %p261, %s20, 0
      %s263 = sadd.s32 %s262, %s260
      %s264 = smul.addr %s263, 8
      %s265 = scalar_lea.vmem %s3, %s264
      %s266 = smul.u32 16, %s19
      %v267 = vld [vmem:[%s243] sm:$0xff]
      %v268 = vld [vmem:[%s243 + $0x8] sm:$0xff]
      %v269 = vld [vmem:[%s243 + $0x10] sm:$0xff]
      %v270 = vld [vmem:[%s243 + $0x18] sm:$0xff]
      %v271 = vld [vmem:[%s243 + $0x20] sm:$0xff]
      %v272 = vld [vmem:[%s243 + $0x28] sm:$0xff]
      %v273 = vld [vmem:[%s243 + $0x30] sm:$0xff]
      %v274 = vld [vmem:[%s243 + $0x38] sm:$0xff]
      %v275 = vld [vmem:[%s243 + $0x40] sm:$0xff]
      %v276 = vld [vmem:[%s243 + $0x48] sm:$0xff]
      %v277 = vld [vmem:[%s243 + $0x50] sm:$0xff]
      %v278 = vld [vmem:[%s243 + $0x58] sm:$0xff]
      %v279 = vld [vmem:[%s243 + $0x60] sm:$0xff]
      %v280 = vld [vmem:[%s243 + $0x68] sm:$0xff]
      %v281 = vld [vmem:[%s243 + $0x70] sm:$0xff]
      %v282 = vld [vmem:[%s243 + $0x78] sm:$0xff]
      %v283 = vld [vmem:[%s253] sm:$0xf]
      %v284 = vld [vmem:[%s253 + $0x4] sm:$0xf]
      %v285 = vld [vmem:[%s253 + $0x8] sm:$0xf]
      %v286 = vld [vmem:[%s253 + $0xc] sm:$0xf]
      %v287 = vld [vmem:[%s253 + $0x10] sm:$0xf]
      %v288 = vld [vmem:[%s253 + $0x14] sm:$0xf]
      %v289 = vld [vmem:[%s253 + $0x18] sm:$0xf]
      %v290 = vld [vmem:[%s253 + $0x1c] sm:$0xf]
      %v291 = vld [vmem:[%s253 + $0x20] sm:$0xf]
      %v292 = vld [vmem:[%s253 + $0x24] sm:$0xf]
      %v293 = vld [vmem:[%s253 + $0x28] sm:$0xf]
      %v294 = vld [vmem:[%s253 + $0x2c] sm:$0xf]
      %v295 = vld [vmem:[%s253 + $0x30] sm:$0xf]
      %v296 = vld [vmem:[%s253 + $0x34] sm:$0xf]
      %v297 = vld [vmem:[%s253 + $0x38] sm:$0xf]
      %v298 = vld [vmem:[%s253 + $0x3c] sm:$0xf]
      %v299 = vld [vmem:[%s253 + $0x40] sm:$0xf]
      %v300 = vld [vmem:[%s253 + $0x44] sm:$0xf]
      %v301 = vld [vmem:[%s253 + $0x48] sm:$0xf]
      %v302 = vld [vmem:[%s253 + $0x4c] sm:$0xf]
      %v303 = vld [vmem:[%s253 + $0x50] sm:$0xf]
      %v304 = vld [vmem:[%s253 + $0x54] sm:$0xf]
      %v305 = vld [vmem:[%s253 + $0x58] sm:$0xf]
      %v306 = vld [vmem:[%s253 + $0x5c] sm:$0xf]
      %v307 = vld [vmem:[%s253 + $0x60] sm:$0xf]
      %v308 = vld [vmem:[%s253 + $0x64] sm:$0xf]
      %v309 = vld [vmem:[%s253 + $0x68] sm:$0xf]
      %v310 = vld [vmem:[%s253 + $0x6c] sm:$0xf]
      %v311 = vld [vmem:[%s253 + $0x70] sm:$0xf]
      %v312 = vld [vmem:[%s253 + $0x74] sm:$0xf]
      %v313 = vld [vmem:[%s253 + $0x78] sm:$0xf]
      %v314 = vld [vmem:[%s253 + $0x7c] sm:$0xf]
      %v315 = vld [vmem:[%s257] sm:$0x1]
      %v317 = vperm.slane %v315, 0
      %v335 = vunpack.c.l.b16 %v267
      %v336 = vunpack.c.h.b16 %v267
      %v337 = vunpack.c.l.b16 %v268
      %v338 = vunpack.c.h.b16 %v268
      %v339 = vunpack.c.l.b16 %v269
      %v340 = vunpack.c.h.b16 %v269
      %v341 = vunpack.c.l.b16 %v270
      %v342 = vunpack.c.h.b16 %v270
      %v343 = vunpack.c.l.b16 %v271
      %v344 = vunpack.c.h.b16 %v271
      %v345 = vunpack.c.l.b16 %v272
      %v346 = vunpack.c.h.b16 %v272
      %v347 = vunpack.c.l.b16 %v273
      %v348 = vunpack.c.h.b16 %v273
      %v349 = vunpack.c.l.b16 %v274
      %v350 = vunpack.c.h.b16 %v274
      %v351 = vunpack.c.l.b16 %v275
      %v352 = vunpack.c.h.b16 %v275
      %v353 = vunpack.c.l.b16 %v276
      %v354 = vunpack.c.h.b16 %v276
      %v355 = vunpack.c.l.b16 %v277
      %v356 = vunpack.c.h.b16 %v277
      %v357 = vunpack.c.l.b16 %v278
      %v358 = vunpack.c.h.b16 %v278
      %v359 = vunpack.c.l.b16 %v279
      %v360 = vunpack.c.h.b16 %v279
      %v361 = vunpack.c.l.b16 %v280
      %v362 = vunpack.c.h.b16 %v280
      %v363 = vunpack.c.l.b16 %v281
      %v364 = vunpack.c.h.b16 %v281
      %v365 = vunpack.c.l.b16 %v282
      %v366 = vunpack.c.h.b16 %v282
      %v367 = vpack.c.b16 %v337, %v335
      %v368 = vpack.c.b16 %v338, %v336
      %v369 = vpack.c.b16 %v341, %v339
      %v370 = vpack.c.b16 %v342, %v340
      %v371 = vpack.c.b16 %v345, %v343
      %v372 = vpack.c.b16 %v346, %v344
      %v373 = vpack.c.b16 %v349, %v347
      %v374 = vpack.c.b16 %v350, %v348
      %v375 = vpack.c.b16 %v353, %v351
      %v376 = vpack.c.b16 %v354, %v352
      %v377 = vpack.c.b16 %v357, %v355
      %v378 = vpack.c.b16 %v358, %v356
      %v379 = vpack.c.b16 %v361, %v359
      %v380 = vpack.c.b16 %v362, %v360
      %v381 = vpack.c.b16 %v365, %v363
      %v382 = vpack.c.b16 %v366, %v364
      %v431 = vunpack.c.l.b16 %v283
      %v432 = vunpack.c.l.b16 %v284
      %v433 = vunpack.c.l.b16 %v285
      %v434 = vunpack.c.l.b16 %v286
      %v435 = vunpack.c.l.b16 %v287
      %v436 = vunpack.c.l.b16 %v288
      %v437 = vunpack.c.l.b16 %v289
      %v438 = vunpack.c.l.b16 %v290
      %v439 = vunpack.c.l.b16 %v291
      %v440 = vunpack.c.l.b16 %v292
      %v441 = vunpack.c.l.b16 %v293
      %v442 = vunpack.c.l.b16 %v294
      %v443 = vunpack.c.l.b16 %v295
      %v444 = vunpack.c.l.b16 %v296
      %v445 = vunpack.c.l.b16 %v297
      %v446 = vunpack.c.l.b16 %v298
      %v447 = vunpack.c.l.b16 %v299
      %v448 = vunpack.c.l.b16 %v300
      %v449 = vunpack.c.l.b16 %v301
      %v450 = vunpack.c.l.b16 %v302
      %v451 = vunpack.c.l.b16 %v303
      %v452 = vunpack.c.l.b16 %v304
      %v453 = vunpack.c.l.b16 %v305
      %v454 = vunpack.c.l.b16 %v306
      %v455 = vunpack.c.l.b16 %v307
      %v456 = vunpack.c.l.b16 %v308
      %v457 = vunpack.c.l.b16 %v309
      %v458 = vunpack.c.l.b16 %v310
      %v459 = vunpack.c.l.b16 %v311
      %v460 = vunpack.c.l.b16 %v312
      %v461 = vunpack.c.l.b16 %v313
      %v462 = vunpack.c.l.b16 %v314
      %v463 = vpack.c.b16 %v432, %v431
      %v464 = vpack.c.b16 %v434, %v433
      %v465 = vpack.c.b16 %v436, %v435
      %v466 = vpack.c.b16 %v438, %v437
      %v467 = vpack.c.b16 %v440, %v439
      %v468 = vpack.c.b16 %v442, %v441
      %v469 = vpack.c.b16 %v444, %v443
      %v470 = vpack.c.b16 %v446, %v445
      %v471 = vpack.c.b16 %v448, %v447
      %v472 = vpack.c.b16 %v450, %v449
      %v473 = vpack.c.b16 %v452, %v451
      %v474 = vpack.c.b16 %v454, %v453
      %v475 = vpack.c.b16 %v456, %v455
      %v476 = vpack.c.b16 %v458, %v457
      %v477 = vpack.c.b16 %v460, %v459
      %v478 = vpack.c.b16 %v462, %v461
      %495 = vmatpush.bf16.msra.mxu0 %v470
      %496 = vmatpush.bf16.msra.mxu0 %v469
      %497 = vmatpush.bf16.msra.mxu0 %v468
      %498 = vmatpush.bf16.msra.mxu0 %v467
      %499 = vmatpush.bf16.msra.mxu0 %v466
      %500 = vmatpush.bf16.msra.mxu0 %v465
      %501 = vmatpush.bf16.msra.mxu0 %v464
      %502 = vmatpush.bf16.msra.mxu0 %v463
      %503 = vmatmul.bf16.gmra.mxu0 %v367
      %v504 = vpop.f32.mrf.mxu0
      %v505 = vadd.f32 %v317, %v504
      %v506 = vpop.f32.mrf.mxu0
      %v507 = vadd.f32 %v317, %v506
      %508 = vmatmul.bf16.gmra.mxu0 %v369
      %v509 = vpop.f32.mrf.mxu0
      %v510 = vadd.f32 %v317, %v509
      %v511 = vpop.f32.mrf.mxu0
      %v512 = vadd.f32 %v317, %v511
      %513 = vmatmul.bf16.gmra.mxu0 %v371
      %v514 = vpop.f32.mrf.mxu0
      %v515 = vadd.f32 %v317, %v514
      %v516 = vpop.f32.mrf.mxu0
      %v517 = vadd.f32 %v317, %v516
      %518 = vmatmul.bf16.gmra.mxu0 %v373
      %v519 = vpop.f32.mrf.mxu0
      %v520 = vadd.f32 %v317, %v519
      %v521 = vpop.f32.mrf.mxu0
      %v522 = vadd.f32 %v317, %v521
      %523 = vmatmul.bf16.gmra.mxu0 %v375
      %v524 = vpop.f32.mrf.mxu0
      %v525 = vadd.f32 %v317, %v524
      %v526 = vpop.f32.mrf.mxu0
      %v527 = vadd.f32 %v317, %v526
      %528 = vmatmul.bf16.gmra.mxu0 %v377
      %v529 = vpop.f32.mrf.mxu0
      %v530 = vadd.f32 %v317, %v529
      %v531 = vpop.f32.mrf.mxu0
      %v532 = vadd.f32 %v317, %v531
      %533 = vmatmul.bf16.gmra.mxu0 %v379
      %v534 = vpop.f32.mrf.mxu0
      %v535 = vadd.f32 %v317, %v534
      %v536 = vpop.f32.mrf.mxu0
      %v537 = vadd.f32 %v317, %v536
      %538 = vmatmul.bf16.gmra.mxu0 %v381
      %v539 = vpop.f32.mrf.mxu0
      %v540 = vadd.f32 %v317, %v539
      %v541 = vpop.f32.mrf.mxu0
      %v542 = vadd.f32 %v317, %v541
      %543 = vdwg.mxu0
      %544 = vmatpush.bf16.msra.mxu0 %v478
      %545 = vmatpush.bf16.msra.mxu0 %v477
      %546 = vmatpush.bf16.msra.mxu0 %v476
      %547 = vmatpush.bf16.msra.mxu0 %v475
      %548 = vmatpush.bf16.msra.mxu0 %v474
      %549 = vmatpush.bf16.msra.mxu0 %v473
      %550 = vmatpush.bf16.msra.mxu0 %v472
      %551 = vmatpush.bf16.msra.mxu0 %v471
      %552 = vmatmul.bf16.gmra.mxu0 %v368
      %v553 = vpop.f32.mrf.mxu0
      %v554 = vadd.f32 %v505, %v553
      %v555 = vpop.f32.mrf.mxu0
      %v556 = vadd.f32 %v507, %v555
      %557 = vmatmul.bf16.gmra.mxu0 %v370
      %v558 = vpop.f32.mrf.mxu0
      %v559 = vadd.f32 %v510, %v558
      %v560 = vpop.f32.mrf.mxu0
      %v561 = vadd.f32 %v512, %v560
      %562 = vmatmul.bf16.gmra.mxu0 %v372
      %v563 = vpop.f32.mrf.mxu0
      %v564 = vadd.f32 %v515, %v563
      %v565 = vpop.f32.mrf.mxu0
      %v566 = vadd.f32 %v517, %v565
      %567 = vmatmul.bf16.gmra.mxu0 %v374
      %v568 = vpop.f32.mrf.mxu0
      %v569 = vadd.f32 %v520, %v568
      %v570 = vpop.f32.mrf.mxu0
      %v571 = vadd.f32 %v522, %v570
      %572 = vmatmul.bf16.gmra.mxu0 %v376
      %v573 = vpop.f32.mrf.mxu0
      %v574 = vadd.f32 %v525, %v573
      %v575 = vpop.f32.mrf.mxu0
      %v576 = vadd.f32 %v527, %v575
      %577 = vmatmul.bf16.gmra.mxu0 %v378
      %v578 = vpop.f32.mrf.mxu0
      %v579 = vadd.f32 %v530, %v578
      %v580 = vpop.f32.mrf.mxu0
      %v581 = vadd.f32 %v532, %v580
      %582 = vmatmul.bf16.gmra.mxu0 %v380
      %v583 = vpop.f32.mrf.mxu0
      %v584 = vadd.f32 %v535, %v583
      %v585 = vpop.f32.mrf.mxu0
      %v586 = vadd.f32 %v537, %v585
      %587 = vmatmul.bf16.gmra.mxu0 %v382
      %v588 = vpop.f32.mrf.mxu0
      %v589 = vadd.f32 %v540, %v588
      %v590 = vpop.f32.mrf.mxu0
      %v591 = vadd.f32 %v542, %v590
      %592 = vdwg.mxu0
      %v593 = vmax.f32 %v554, 0.0
      %v594 = vmax.f32 %v556, 0.0
      %v595 = vmax.f32 %v559, 0.0
      %v596 = vmax.f32 %v561, 0.0
      %v597 = vmax.f32 %v564, 0.0
      %v598 = vmax.f32 %v566, 0.0
      %v599 = vmax.f32 %v569, 0.0
      %v600 = vmax.f32 %v571, 0.0
      %v601 = vmax.f32 %v574, 0.0
      %v602 = vmax.f32 %v576, 0.0
      %v603 = vmax.f32 %v579, 0.0
      %v604 = vmax.f32 %v581, 0.0
      %v605 = vmax.f32 %v584, 0.0
      %v606 = vmax.f32 %v586, 0.0
      %v607 = vmax.f32 %v589, 0.0
      %v608 = vmax.f32 %v591, 0.0
      %609 = vst [vmem:[%s265] sm:$0xff] %v593
      %610 = vst [vmem:[%s265 + $0x8] sm:$0xff] %v594
      %611 = vst [vmem:[%s265 + $0x10] sm:$0xff] %v595
      %612 = vst [vmem:[%s265 + $0x18] sm:$0xff] %v596
      %613 = vst [vmem:[%s265 + $0x20] sm:$0xff] %v597
      %614 = vst [vmem:[%s265 + $0x28] sm:$0xff] %v598
      %615 = vst [vmem:[%s265 + $0x30] sm:$0xff] %v599
      %616 = vst [vmem:[%s265 + $0x38] sm:$0xff] %v600
      %617 = vst [vmem:[%s265 + $0x40] sm:$0xff] %v601
      %618 = vst [vmem:[%s265 + $0x48] sm:$0xff] %v602
      %619 = vst [vmem:[%s265 + $0x50] sm:$0xff] %v603
      %620 = vst [vmem:[%s265 + $0x58] sm:$0xff] %v604
      %621 = vst [vmem:[%s265 + $0x60] sm:$0xff] %v605
      %622 = vst [vmem:[%s265 + $0x68] sm:$0xff] %v606
      %623 = vst [vmem:[%s265 + $0x70] sm:$0xff] %v607
      %624 = vst [vmem:[%s265 + $0x78] sm:$0xff] %v608
      %s625 = smul.u32 16, %s19
      %p626 = scmp.lt.s32.totalorder %s625, 31
      %s627 = scalar_select %p626, %s625, 31
      %p628 = scmp.lt.s32.totalorder %s20, 0
      %s629 = scalar_select %p628, %s20, 0
      %s630 = sadd.s32 %s629, %s627
      %s631 = smul.addr %s630, 8
      %s632 = scalar_lea.vmem %s3, %s631
      // Predicated region
      $region33: #{graph_encoder_forward.7} parent=31 // pred_check
        %p633 = pneg %p135
      $region34: #{graph_encoder_forward.7} parent=31 // pred_check_branch
        %635 = sbr.rel (%p633) target = $region36
      $region35: #{graph_encoder_forward.7} parent=31 // pred_region
        %s636 = smul.u32 16, %s19
      $region36: #{graph_encoder_forward.7} parent=31 // pred_fallthru
        _
    $region32: #{graph_encoder_forward.7} parent=5 // pred_fallthru
      _
    %p637 = scmp.le.s32.totalorder 2, %s9
    // Predicated region
    $region37: #{graph_encoder_forward.7} parent=5 // pred_check
      %p638 = pneg %p637
    $region38: #{graph_encoder_forward.7} parent=5 // pred_check_branch
      %640 = sbr.rel (%p638) target = $region40
    $region39: #{graph_encoder_forward.7} parent=5 // pred_region
      %s641 = ssub.s32 %s9, 2
      // Predicated region
      $region41: #{graph_encoder_forward.7} parent=39 // pred_check
        %p642 = pneg %p141
      $region42: #{graph_encoder_forward.7} parent=39 // pred_check_branch
        %644 = sbr.rel (%p642) target = $region44
      $region43: #{graph_encoder_forward.7} parent=39 // pred_region
        %s645 = smul.u32 16, %s22
        %p646 = scmp.lt.s32.totalorder %s645, 31
        %s647 = scalar_select %p646, %s645, 31
        %p648 = scmp.lt.s32.totalorder %s23, 0
        %s649 = scalar_select %p648, %s23, 0
        %s650 = sadd.s32 %s649, %s647
        %s651 = smul.addr %s650, 8
        %s652 = scalar_lea.vmem %s3, %s651
      $region44: #{graph_encoder_forward.7} parent=39 // pred_fallthru
        _
    $region40: #{graph_encoder_forward.7} parent=5 // pred_fallthru
      _
  $region6: #{graph_encoder_forward.7} parent=0 // loop_footer
    %s13 = sadd.s32 1, %s9
  $region7: #{graph_encoder_forward.7} parent=0 // loop_footer_branch
    %8 = sbr.rel target = $region3
  $region8: #{graph_encoder_forward.7} parent=0 // loop_exit
    _

// kernel: graph_encoder_forward.11
$region0: #{graph_encoder_forward.11}
  #allocation0 [shape = 'u32[]', space=smem, size = 0x4, offset = 0x4, fixed_abs, tag = 'smem constant byte address 0x4 - core index']
  #allocation1 [shape = 'u32[72,128]{1,0:T(1,128)}', space=vmem, size = 0x9000, scoped, tag = 'internal scratch']
  %s0 = inlined_call_operand.vmem [shape: bf16[256,128], index: 0, kind: input, shape index: {}]
  %s1 = inlined_call_operand.vmem [shape: bf16[128,128], index: 1, kind: input, shape index: {}]
  %s2 = inlined_call_operand.vmem [shape: f32[1,128], index: 2, kind: input, shape index: {}]
  %s3 = inlined_call_operand.hbm [shape: f32[256,128], index: 3, kind: output, shape index: {}]
  %s4 = sld [smem:[#allocation0]]
  $region45: #{graph_encoder_forward.11} parent=0
    _
  %s6 = ssub.s32 1, %s4
  %s7 = scalar_select 0, %s6, %s4
  $region1: #{graph_encoder_forward.11} parent=0
    #allocation2 [shape = 'u8[131072]{0}', space=vmem, size = 0x20000, scoped, tag = 'output window, operand 0']
    #allocation3 [shape = 's32[2]{0}', space=sflag, size = 0x8, scoped, tag = 'scoped memory for graph_encoder_forward.11']
    %8 = vsyncpa [#allocation3], 0
    %s9 = scalar_lea.sflag [#allocation3], 1
    %10 = vsyncpa %s9, 0
    loop: start=0, step=1, limit=4
    $region2: #{graph_encoder_forward.11} parent=1 // loop_pre_header
      _
    $region3: #{graph_encoder_forward.11} parent=1 // loop_header
      %s12 = sphi 0, %s16
      %p13 = scmp.ge.s32.totalorder %s12, 4
      %s19 = sphi 0, %s38
      %s20 = sphi 0, %s34
      %s21 = sphi 0, %s30
      %s22 = sphi 0, %s19
      %s23 = sphi 0, %s20
      %s24 = sphi 0, %s21
      %s25 = sphi 0, %s22
      %s26 = sphi 0, %s23
      %s27 = sphi 0, %s24
      %s43 = sphi 0, %s45
      %s46 = sphi 0, %s43
      %s47 = sphi 0, %s46
      %s63 = sphi 0, %s47
      %s71 = sphi 0, %s73
      %s74 = sphi 0, %s71
      %s75 = sphi 0, %s74
      %s91 = sphi 0, %s75
      %s97 = sphi 0, %s99
      %s100 = sphi 0, %s97
      %s101 = sphi 0, %s100
      %s117 = sphi 0, %s101
      %s125 = sphi 0, %s127
      %s128 = sphi 0, %s125
      %s129 = sphi 0, %s128
      %s145 = sphi 0, %s129
    $region4: #{graph_encoder_forward.11} parent=1 // loop_header_branch
      %15 = sbr.rel (%p13) target = $region8
    $region5: #{graph_encoder_forward.11} parent=1 // loop_body
      %s17 = ssub.s32 %s12, 1
      %s18 = ssub.s32 %s12, 2
      %s28 = sadd.s32 1, %s21
      %p29 = scmp.ge.s32.totalorder %s28, 1
      %s30 = scalar_select %p29, 0, %s28
      %s31 = sadd.s32 1, %s20
      %s32 = scalar_select %p29, %s31, %s20
      %p33 = scmp.ge.s32.totalorder %s32, 1
      %s34 = scalar_select %p33, 0, %s32
      %s35 = sadd.s32 1, %s19
      %s36 = scalar_select %p33, %s35, %s19
      %p37 = scmp.ge.s32.totalorder %s36, 2
      %s38 = scalar_select %p37, 0, %s36
      %s39 = ssub.s32 %s19, %s38
      %s40 = ssub.s32 %s21, %s30
      %s41 = sor.u32 %s39, %s40
      %p42 = scmp.eq.s32.totalorder %s41, 0
      %s44 = sadd.s32 %s43, 1
      %s45 = scalar_select %p42, %s43, %s44
      %p48 = pneg %p42
      %p49 = scmp.eq.s32.totalorder %s12, 1
      %p50 = por %p48, %p49
      %p51 = scmp.ne.s32.totalorder %s43, %s46
      %p52 = scmp.eq.s32.totalorder %s12, 0
      %p53 = por %p51, %p52
      %p54 = scmp.ne.s32.totalorder %s43, %s46
      %p55 = scmp.eq.s32.totalorder %s17, 1
      %p56 = por %p54, %p55
      %p57 = scmp.ne.s32.totalorder %s46, %s47
      %p58 = scmp.eq.s32.totalorder %s17, 0
      %p59 = por %p57, %p58
      %p60 = scmp.ne.s32.totalorder %s46, %s47
      %p61 = scmp.eq.s32.totalorder %s18, 1
      %p62 = por %p60, %p61
      %p64 = scmp.ne.s32.totalorder %s47, %s63
      %p65 = scmp.eq.s32.totalorder %s18, 0
      %p66 = por %p64, %p65
      %s67 = ssub.s32 %s21, %s30
      %s68 = ssub.s32 %s20, %s34
      %s69 = sor.u32 %s67, %s68
      %p70 = scmp.eq.s32.totalorder %s69, 0
      %s72 = sadd.s32 %s71, 1
      %s73 = scalar_select %p70, %s71, %s72
      %p76 = pneg %p70
      %p77 = scmp.eq.s32.totalorder %s12, 1
      %p78 = por %p76, %p77
      %p79 = scmp.ne.s32.totalorder %s71, %s74
      %p80 = scmp.eq.s32.totalorder %s12, 0
      %p81 = por %p79, %p80
      %p82 = scmp.ne.s32.totalorder %s71, %s74
      %p83 = scmp.eq.s32.totalorder %s17, 1
      %p84 = por %p82, %p83
      %p85 = scmp.ne.s32.totalorder %s74, %s75
      %p86 = scmp.eq.s32.totalorder %s17, 0
      %p87 = por %p85, %p86
      %p88 = scmp.ne.s32.totalorder %s74, %s75
      %p89 = scmp.eq.s32.totalorder %s18, 1
      %p90 = por %p88, %p89
      %p92 = scmp.ne.s32.totalorder %s75, %s91
      %p93 = scmp.eq.s32.totalorder %s18, 0
      %p94 = por %p92, %p93
      %s95 = ssub.s32 %s20, %s34
      %p96 = scmp.eq.s32.totalorder %s95, 0
      %s98 = sadd.s32 %s97, 1
      %s99 = scalar_select %p96, %s97, %s98
      %p102 = pneg %p96
      %p103 = scmp.eq.s32.totalorder %s12, 1
      %p104 = por %p102, %p103
      %p105 = scmp.ne.s32.totalorder %s97, %s100
      %p106 = scmp.eq.s32.totalorder %s12, 0
      %p107 = por %p105, %p106
      %p108 = scmp.ne.s32.totalorder %s97, %s100
      %p109 = scmp.eq.s32.totalorder %s17, 1
      %p110 = por %p108, %p109
      %p111 = scmp.ne.s32.totalorder %s100, %s101
      %p112 = scmp.eq.s32.totalorder %s17, 0
      %p113 = por %p111, %p112
      %p114 = scmp.ne.s32.totalorder %s100, %s101
      %p115 = scmp.eq.s32.totalorder %s18, 1
      %p116 = por %p114, %p115
      %p118 = scmp.ne.s32.totalorder %s101, %s117
      %p119 = scmp.eq.s32.totalorder %s18, 0
      %p120 = por %p118, %p119
      %s121 = ssub.s32 %s19, %s38
      %s122 = ssub.s32 %s20, %s34
      %s123 = sor.u32 %s121, %s122
      %p124 = scmp.eq.s32.totalorder %s123, 0
      %s126 = sadd.s32 %s125, 1
      %s127 = scalar_select %p124, %s125, %s126
      %p130 = pneg %p124
      %p131 = scmp.eq.s32.totalorder %s12, 1
      %p132 = por %p130, %p131
      %p133 = scmp.ne.s32.totalorder %s125, %s128
      %p134 = scmp.eq.s32.totalorder %s12, 0
      %p135 = por %p133, %p134
      %p136 = scmp.ne.s32.totalorder %s125, %s128
      %p137 = scmp.eq.s32.totalorder %s17, 1
      %p138 = por %p136, %p137
      %p139 = scmp.ne.s32.totalorder %s128, %s129
      %p140 = scmp.eq.s32.totalorder %s17, 0
      %p141 = por %p139, %p140
      %p142 = scmp.ne.s32.totalorder %s128, %s129
      %p143 = scmp.eq.s32.totalorder %s18, 1
      %p144 = por %p142, %p143
      %p146 = scmp.ne.s32.totalorder %s129, %s145
      %p147 = scmp.eq.s32.totalorder %s18, 0
      %p148 = por %p146, %p147
      %p149 = scmp.le.s32.totalorder 1, %s12
      %p150 = scmp.lt.s32.totalorder %s12, 3
      %p151 = pnand %p149, %p150
      %p152 = pneg %p151
      // Predicated region
      $region9: #{graph_encoder_forward.11} parent=5 // pred_check
        _
      $region10: #{graph_encoder_forward.11} parent=5 // pred_check_branch
        %154 = sbr.rel (%p151) target = $region12
      $region11: #{graph_encoder_forward.11} parent=5 // pred_region
        %s155 = ssub.s32 %s12, 1
        // Predicated region
        $region13: #{graph_encoder_forward.11} parent=11 // pred_check
          %p156 = pneg %p87
        $region14: #{graph_encoder_forward.11} parent=11 // pred_check_branch
          %158 = sbr.rel (%p156) target = $region16
        $region15: #{graph_encoder_forward.11} parent=11 // pred_region
          %s159 = smul.u32 16, %s24
          %p160 = scmp.lt.s32.totalorder %s159, 15
          %s161 = scalar_select %p160, %s159, 15
          %p162 = scmp.lt.s32.totalorder %s23, 0
          %s163 = scalar_select %p162, %s23, 0
          %s164 = sadd.s32 %s163, %s161
          %s165 = smul.addr %s164, 4
          %s166 = scalar_lea.vmem %s1, %s165
          %s167 = smul.u32 16, %s24
        $region16: #{graph_encoder_forward.11} parent=11 // pred_fallthru
          _
        // Predicated region
        $region17: #{graph_encoder_forward.11} parent=11 // pred_check
          %p168 = pneg %p113
        $region18: #{graph_encoder_forward.11} parent=11 // pred_check_branch
          %170 = sbr.rel (%p168) target = $region20
        $region19: #{graph_encoder_forward.11} parent=11 // pred_region
          %p171 = scmp.lt.s32.totalorder %s23, 0
          %s172 = scalar_select %p171, %s23, 0
          %s173 = scalar_lea.vmem %s2, %s172
        $region20: #{graph_encoder_forward.11} parent=11 // pred_fallthru
          _
      $region12: #{graph_encoder_forward.11} parent=5 // pred_fallthru
        _
      %p174 = scmp.lt.s32.totalorder %s12, 2
      // Predicated region
      $region21: #{graph_encoder_forward.11} parent=5 // pred_check
        %p175 = pneg %p174
      $region22: #{graph_encoder_forward.11} parent=5 // pred_check_branch
        %177 = sbr.rel (%p175) target = $region24
      $region23: #{graph_encoder_forward.11} parent=5 // pred_region
        // Predicated region
        $region25: #{graph_encoder_forward.11} parent=23 // pred_check
          %p178 = pneg %p53
        $region26: #{graph_encoder_forward.11} parent=23 // pred_check_branch
          %180 = sbr.rel (%p178) target = $region28
        $region27: #{graph_encoder_forward.11} parent=23 // pred_region
          %s181 = smul.u32 16, %s19
          %p182 = scmp.lt.s32.totalorder %s181, 31
          %s183 = scalar_select %p182, %s181, 31
          %p184 = scmp.lt.s32.totalorder %s21, 0
          %s185 = scalar_select %p184, %s21, 0
          %s186 = sadd.s32 %s185, %s183
          %s187 = smul.addr %s186, 4
          %s188 = scalar_lea.vmem %s0, %s187
          %s189 = smul.u32 16, %s19
        $region28: #{graph_encoder_forward.11} parent=23 // pred_fallthru
          _
      $region24: #{graph_encoder_forward.11} parent=5 // pred_fallthru
        _
      %p190 = scmp.le.s32.totalorder 1, %s12
      %p191 = scmp.lt.s32.totalorder %s12, 3
      %p192 = pnand %p190, %p191
      %p193 = pneg %p192
      // Predicated region
      $region29: #{graph_encoder_forward.11} parent=5 // pred_check
        _
      $region30: #{graph_encoder_forward.11} parent=5 // pred_check_branch
        %195 = sbr.rel (%p192) target = $region32
      $region31: #{graph_encoder_forward.11} parent=5 // pred_region
        %s196 = ssub.s32 %s12, 1
        %s197 = smul.u32 16, %s22
        %p198 = scmp.lt.s32.totalorder %s197, 31
        %s199 = scalar_select %p198, %s197, 31
        %p200 = scmp.lt.s32.totalorder %s24, 0
        %s201 = scalar_select %p200, %s24, 0
        %s202 = sadd.s32 %s201, %s199
        %s203 = smul.addr %s202, 4
        %s204 = scalar_lea.vmem %s0, %s203
        %p205 = pneg %p59
        %p206 = pneg %p56
        %s207 = smul.u32 16, %s24
        %p208 = scmp.lt.s32.totalorder %s207, 15
        %s209 = scalar_select %p208, %s207, 15
        %p210 = scmp.lt.s32.totalorder %s23, 0
        %s211 = scalar_select %p210, %s23, 0
        %s212 = sadd.s32 %s211, %s209
        %s213 = smul.addr %s212, 4
        %s214 = scalar_lea.vmem %s1, %s213
        %p215 = pneg %p87
        %p216 = pneg %p84
        %p217 = scmp.lt.s32.totalorder %s23, 0
        %s218 = scalar_select %p217, %s23, 0
        %s219 = scalar_lea.vmem %s2, %s218
        %p220 = pneg %p113
        %p221 = pneg %p110
        %p222 = pneg %p141
        %p223 = pneg %p138
        %s224 = sand.u32 %s128, 1
        %s225 = scalar_lea.sflag [#allocation3], %s224
        %s226 = sand.u32 %s128, 1
        %s227 = smul.addr %s226, 128
        %s228 = scalar_lea.vmem [#allocation2], %s227
        %s229 = smul.u32 16, %s22
        %p230 = scmp.lt.s32.totalorder %s229, 31
        %s231 = scalar_select %p230, %s229, 31
        %p232 = scmp.lt.s32.totalorder %s24, 0
        %s233 = scalar_select %p232, %s24, 0
        %s234 = sadd.s32 %s233, %s231
        %s235 = smul.addr %s234, 4
        %s236 = scalar_lea.vmem %s0, %s235
        %s237 = smul.u32 16, %s22
        %s238 = smul.u32 16, %s24
        %p239 = scmp.lt.s32.totalorder %s238, 15
        %s240 = scalar_select %p239, %s238, 15
        %p241 = scmp.lt.s32.totalorder %s23, 0
        %s242 = scalar_select %p241, %s23, 0
        %s243 = sadd.s32 %s242, %s240
        %s244 = smul.addr %s243, 4
        %s245 = scalar_lea.vmem %s1, %s244
        %s246 = smul.u32 16, %s24
        %p247 = scmp.lt.s32.totalorder %s23, 0
        %s248 = scalar_select %p247, %s23, 0
        %s249 = scalar_lea.vmem %s2, %s248
        %s250 = smul.u32 16, %s22
        %v251 = vld [vmem:[%s236] sm:$0xf]
        %v252 = vld [vmem:[%s236 + $0x4] sm:$0xf]
        %v253 = vld [vmem:[%s236 + $0x8] sm:$0xf]
        %v254 = vld [vmem:[%s236 + $0xc] sm:$0xf]
        %v255 = vld [vmem:[%s236 + $0x10] sm:$0xf]
        %v256 = vld [vmem:[%s236 + $0x14] sm:$0xf]
        %v257 = vld [vmem:[%s236 + $0x18] sm:$0xf]
        %v258 = vld [vmem:[%s236 + $0x1c] sm:$0xf]
        %v259 = vld [vmem:[%s236 + $0x20] sm:$0xf]
        %v260 = vld [vmem:[%s236 + $0x24] sm:$0xf]
        %v261 = vld [vmem:[%s236 + $0x28] sm:$0xf]
        %v262 = vld [vmem:[%s236 + $0x2c] sm:$0xf]
        %v263 = vld [vmem:[%s236 + $0x30] sm:$0xf]
        %v264 = vld [vmem:[%s236 + $0x34] sm:$0xf]
        %v265 = vld [vmem:[%s236 + $0x38] sm:$0xf]
        %v266 = vld [vmem:[%s236 + $0x3c] sm:$0xf]
        %v267 = vld [vmem:[%s245] sm:$0xf]
        %v268 = vld [vmem:[%s245 + $0x4] sm:$0xf]
        %v269 = vld [vmem:[%s245 + $0x8] sm:$0xf]
        %v270 = vld [vmem:[%s245 + $0xc] sm:$0xf]
        %v271 = vld [vmem:[%s245 + $0x10] sm:$0xf]
        %v272 = vld [vmem:[%s245 + $0x14] sm:$0xf]
        %v273 = vld [vmem:[%s245 + $0x18] sm:$0xf]
        %v274 = vld [vmem:[%s245 + $0x1c] sm:$0xf]
        %v275 = vld [vmem:[%s245 + $0x20] sm:$0xf]
        %v276 = vld [vmem:[%s245 + $0x24] sm:$0xf]
        %v277 = vld [vmem:[%s245 + $0x28] sm:$0xf]
        %v278 = vld [vmem:[%s245 + $0x2c] sm:$0xf]
        %v279 = vld [vmem:[%s245 + $0x30] sm:$0xf]
        %v280 = vld [vmem:[%s245 + $0x34] sm:$0xf]
        %v281 = vld [vmem:[%s245 + $0x38] sm:$0xf]
        %v282 = vld [vmem:[%s245 + $0x3c] sm:$0xf]
        %v283 = vld [vmem:[%s249] sm:$0x1]
        %v285 = vperm.slane %v283, 0
        %v303 = vunpack.c.l.b16 %v251
        %v304 = vunpack.c.l.b16 %v252
        %v305 = vunpack.c.l.b16 %v253
        %v306 = vunpack.c.l.b16 %v254
        %v307 = vunpack.c.l.b16 %v255
        %v308 = vunpack.c.l.b16 %v256
        %v309 = vunpack.c.l.b16 %v257
        %v310 = vunpack.c.l.b16 %v258
        %v311 = vunpack.c.l.b16 %v259
        %v312 = vunpack.c.l.b16 %v260
        %v313 = vunpack.c.l.b16 %v261
        %v314 = vunpack.c.l.b16 %v262
        %v315 = vunpack.c.l.b16 %v263
        %v316 = vunpack.c.l.b16 %v264
        %v317 = vunpack.c.l.b16 %v265
        %v318 = vunpack.c.l.b16 %v266
        %v319 = vpack.c.b16 %v304, %v303
        %v320 = vpack.c.b16 %v306, %v305
        %v321 = vpack.c.b16 %v308, %v307
        %v322 = vpack.c.b16 %v310, %v309
        %v323 = vpack.c.b16 %v312, %v311
        %v324 = vpack.c.b16 %v314, %v313
        %v325 = vpack.c.b16 %v316, %v315
        %v326 = vpack.c.b16 %v318, %v317
        %v351 = vunpack.c.l.b16 %v267
        %v352 = vunpack.c.l.b16 %v268
        %v353 = vunpack.c.l.b16 %v269
        %v354 = vunpack.c.l.b16 %v270
        %v355 = vunpack.c.l.b16 %v271
        %v356 = vunpack.c.l.b16 %v272
        %v357 = vunpack.c.l.b16 %v273
        %v358 = vunpack.c.l.b16 %v274
        %v359 = vunpack.c.l.b16 %v275
        %v360 = vunpack.c.l.b16 %v276
        %v361 = vunpack.c.l.b16 %v277
        %v362 = vunpack.c.l.b16 %v278
        %v363 = vunpack.c.l.b16 %v279
        %v364 = vunpack.c.l.b16 %v280
        %v365 = vunpack.c.l.b16 %v281
        %v366 = vunpack.c.l.b16 %v282
        %v367 = vpack.c.b16 %v352, %v351
        %v368 = vpack.c.b16 %v354, %v353
        %v369 = vpack.c.b16 %v356, %v355
        %v370 = vpack.c.b16 %v358, %v357
        %v371 = vpack.c.b16 %v360, %v359
        %v372 = vpack.c.b16 %v362, %v361
        %v373 = vpack.c.b16 %v364, %v363
        %v374 = vpack.c.b16 %v366, %v365
        %383 = vmatpush.bf16.msra.mxu0 %v374
        %384 = vmatpush.bf16.msra.mxu0 %v373
        %385 = vmatpush.bf16.msra.mxu0 %v372
        %386 = vmatpush.bf16.msra.mxu0 %v371
        %387 = vmatpush.bf16.msra.mxu0 %v370
        %388 = vmatpush.bf16.msra.mxu0 %v369
        %389 = vmatpush.bf16.msra.mxu0 %v368
        %390 = vmatpush.bf16.msra.mxu0 %v367
        %391 = vmatmul.bf16.gmra.mxu0 %v319
        %v392 = vpop.f32.mrf.mxu0
        %v393 = vadd.f32 %v285, %v392
        %v394 = vpop.f32.mrf.mxu0
        %v395 = vadd.f32 %v285, %v394
        %396 = vmatmul.bf16.gmra.mxu0 %v320
        %v397 = vpop.f32.mrf.mxu0
        %v398 = vadd.f32 %v285, %v397
        %v399 = vpop.f32.mrf.mxu0
        %v400 = vadd.f32 %v285, %v399
        %401 = vmatmul.bf16.gmra.mxu0 %v321
        %v402 = vpop.f32.mrf.mxu0
        %v403 = vadd.f32 %v285, %v402
        %v404 = vpop.f32.mrf.mxu0
        %v405 = vadd.f32 %v285, %v404
        %406 = vmatmul.bf16.gmra.mxu0 %v322
        %v407 = vpop.f32.mrf.mxu0
        %v408 = vadd.f32 %v285, %v407
        %v409 = vpop.f32.mrf.mxu0
        %v410 = vadd.f32 %v285, %v409
        %411 = vmatmul.bf16.gmra.mxu0 %v323
        %v412 = vpop.f32.mrf.mxu0
        %v413 = vadd.f32 %v285, %v412
        %v414 = vpop.f32.mrf.mxu0
        %v415 = vadd.f32 %v285, %v414
        %416 = vmatmul.bf16.gmra.mxu0 %v324
        %v417 = vpop.f32.mrf.mxu0
        %v418 = vadd.f32 %v285, %v417
        %v419 = vpop.f32.mrf.mxu0
        %v420 = vadd.f32 %v285, %v419
        %421 = vmatmul.bf16.gmra.mxu0 %v325
        %v422 = vpop.f32.mrf.mxu0
        %v423 = vadd.f32 %v285, %v422
        %v424 = vpop.f32.mrf.mxu0
        %v425 = vadd.f32 %v285, %v424
        %426 = vmatmul.bf16.gmra.mxu0 %v326
        %v427 = vpop.f32.mrf.mxu0
        %v428 = vadd.f32 %v285, %v427
        %v429 = vpop.f32.mrf.mxu0
        %v430 = vadd.f32 %v285, %v429
        %431 = vdwg.mxu0
        %432 = vst [vmem:[%s228] sm:$0xff] %v393
        %433 = vst [vmem:[%s228 + $0x8] sm:$0xff] %v395
        %434 = vst [vmem:[%s228 + $0x10] sm:$0xff] %v398
        %435 = vst [vmem:[%s228 + $0x18] sm:$0xff] %v400
        %436 = vst [vmem:[%s228 + $0x20] sm:$0xff] %v403
        %437 = vst [vmem:[%s228 + $0x28] sm:$0xff] %v405
        %438 = vst [vmem:[%s228 + $0x30] sm:$0xff] %v408
        %439 = vst [vmem:[%s228 + $0x38] sm:$0xff] %v410
        %440 = vst [vmem:[%s228 + $0x40] sm:$0xff] %v413
        %441 = vst [vmem:[%s228 + $0x48] sm:$0xff] %v415
        %442 = vst [vmem:[%s228 + $0x50] sm:$0xff] %v418
        %443 = vst [vmem:[%s228 + $0x58] sm:$0xff] %v420
        %444 = vst [vmem:[%s228 + $0x60] sm:$0xff] %v423
        %445 = vst [vmem:[%s228 + $0x68] sm:$0xff] %v425
        %446 = vst [vmem:[%s228 + $0x70] sm:$0xff] %v428
        %447 = vst [vmem:[%s228 + $0x78] sm:$0xff] %v430
        %s448 = sand.u32 %s128, 1
        %s449 = scalar_lea.sflag [#allocation3], %s448
        %s450 = sand.u32 %s128, 1
        %s451 = smul.addr %s450, 128
        %s452 = scalar_lea.vmem [#allocation2], %s451
        // Predicated region
        $region33: #{graph_encoder_forward.11} parent=31 // pred_check
          %p453 = pneg %p138
        $region34: #{graph_encoder_forward.11} parent=31 // pred_check_branch
          %455 = sbr.rel (%p453) target = $region36
        $region35: #{graph_encoder_forward.11} parent=31 // pred_region
          %s456 = smul.u32 16, %s22
          %458 = vsyncadd %s449, 0
          %s459 = sadd.s32 %s23, %s456
          %s460 = smul.addr %s459, 8
          %s461 = scalar_lea.hbm %s3, %s460
          %s462 = sshll.u32 %s452, 4
          %s463 = int_to_ptr.vmem [resolvable:$true] %s462
          %s464 = sshll.u32 %s461, 4
          %s465 = int_to_ptr.hbm [resolvable:$true] %s464
          %470 = dma.vmem_to_hbm [thread:$0]  %s463, 2048, %s465, %s449, 128, 128, 8
        $region36: #{graph_encoder_forward.11} parent=31 // pred_fallthru
          _
      $region32: #{graph_encoder_forward.11} parent=5 // pred_fallthru
        _
      %p471 = scmp.le.s32.totalorder 2, %s12
      // Predicated region
      $region37: #{graph_encoder_forward.11} parent=5 // pred_check
        %p472 = pneg %p471
      $region38: #{graph_encoder_forward.11} parent=5 // pred_check_branch
        %474 = sbr.rel (%p472) target = $region40
      $region39: #{graph_encoder_forward.11} parent=5 // pred_region
        %s475 = ssub.s32 %s12, 2
        // Predicated region
        $region41: #{graph_encoder_forward.11} parent=39 // pred_check
          %p476 = pneg %p144
        $region42: #{graph_encoder_forward.11} parent=39 // pred_check_branch
          %478 = sbr.rel (%p476) target = $region44
        $region43: #{graph_encoder_forward.11} parent=39 // pred_region
          %s479 = sand.u32 %s129, 1
          %s480 = scalar_lea.sflag [#allocation3], %s479
          %s481 = sand.u32 %s129, 1
          %s482 = smul.addr %s481, 128
          %s483 = scalar_lea.vmem [#allocation2], %s482
          %485 = dma.done %s480, 2048
        $region44: #{graph_encoder_forward.11} parent=39 // pred_fallthru
          _
      $region40: #{graph_encoder_forward.11} parent=5 // pred_fallthru
        _
    $region6: #{graph_encoder_forward.11} parent=1 // loop_footer
      %s16 = sadd.s32 1, %s12
    $region7: #{graph_encoder_forward.11} parent=1 // loop_footer_branch
      %11 = sbr.rel target = $region3
    $region8: #{graph_encoder_forward.11} parent=1 // loop_exit
      _
    %486 = vsyncpa [#allocation3], 1
    %s487 = scalar_lea.sflag [#allocation3], 1
    %488 = vsyncpa %s487, 1

</llo_original>
